<compile_context>
chip_gen: v5e
topology: v5e:2x2
jax: 0.10.0
libtpu: 0.0.40
codegen_flags: <defaults>
</compile_context>

<pallas_src>
import jax
import jax.numpy as jnp
from jax.experimental import pallas as pl
from jax.experimental.pallas import tpu as pltpu

# --- hyperparameters from the PyTorch script -------------------------------
C1_CHANNELS = 6
C1_KERNEL = 5
C1_PADDING = 2
C2_CHANNELS = (6, 16)
C2_KERNEL = 5
C2_PADDING = 0
L1_FEATURES = 120
L2_FEATURES = 84
L_OUT_FEATURES = 10

# decomposition ranks: in the original script these come from a pretrained
# `netDec` module; chosen deterministically here (synthetic kernel).
R_C1 = 4      # conv1[0].out_channels
R1_C2 = 8     # conv2[0].out_channels
R2_C2 = 8     # conv2[1].out_channels
R1_L1 = 64    # l1[0].out_features
R2_L1 = 48    # l1[1].out_features
R_L2 = 32     # l2[0].out_features


def conv_dim(dim, kernel, stride, padding):
    return int((dim - kernel + 2 * padding) / stride + 1)


# ---------------- Pallas kernels -------------------------------------------

def _conv1_kernel(p_ref, w1_ref, w2_ref, b2_ref, o_ref):
    # p: (25, N*28*28) im2col patches^T of the padded input
    # w1: (r_c1, 25)  w2: (6, r_c1)  b2: (6, 1)
    h = jnp.dot(w1_ref[...], p_ref[...], preferred_element_type=jnp.float32)
    h = jnp.maximum(h, 0.0)                                        # relu(c1_1), bias=False
    h = jnp.dot(w2_ref[...], h, preferred_element_type=jnp.float32) + b2_ref[...]
    o_ref[...] = jnp.maximum(h, 0.0)                               # relu(c1_2)


def _conv2_kernel(p_ref, w1b_ref, w2_ref, w3_ref, b3_ref, o_ref):
    # p: (25*6, N*10*10) patches^T of the pooled conv1 output, rows ordered (kh, kw, ci)
    # w1b = kron(I_25, W_c2_1): applying it per patch pixel == 1x1 conv before the 5x5 conv
    a = jnp.dot(w1b_ref[...], p_ref[...], preferred_element_type=jnp.float32)
    a = jnp.maximum(a, 0.0)                                        # relu(c2_1), bias=False
    a = jnp.dot(w2_ref[...], a, preferred_element_type=jnp.float32)
    a = jnp.maximum(a, 0.0)                                        # relu(c2_2), bias=False
    a = jnp.dot(w3_ref[...], a, preferred_element_type=jnp.float32) + b3_ref[...]
    o_ref[...] = jnp.maximum(a, 0.0)                               # relu(c2_3)


def _fc_kernel(x_ref, w11_ref, w12_ref, w13_ref, b13_ref,
               w21_ref, w22_ref, b22_ref, wo_ref, bo_ref, o_ref):
    # Entire l1 -> l2 -> l_out chain + softmax on one resident tile.
    f32 = jnp.float32
    y = jnp.maximum(jnp.dot(x_ref[...], w11_ref[...], preferred_element_type=f32), 0.0)
    y = jnp.maximum(jnp.dot(y, w12_ref[...], preferred_element_type=f32), 0.0)
    y = jnp.maximum(jnp.dot(y, w13_ref[...], preferred_element_type=f32) + b13_ref[...], 0.0)
    y = jnp.maximum(jnp.dot(y, w21_ref[...], preferred_element_type=f32), 0.0)
    y = jnp.maximum(jnp.dot(y, w22_ref[...], preferred_element_type=f32) + b22_ref[...], 0.0)
    z = jnp.dot(y, wo_ref[...], preferred_element_type=f32) + bo_ref[...]
    m = jnp.max(z, axis=-1, keepdims=True)
    e = jnp.exp(z - m)
    s = jnp.sum(e, axis=-1, keepdims=True)
    o_ref[...] = e * pl.reciprocal(s, approx=True)                 # divide on the EUP slot


def _vmem():
    return pl.BlockSpec(memory_space=pltpu.MemorySpace.VMEM)


def _call(kernel, out_shape, *args):
    # Everything is tiny (well under 1 MiB), so run gridless with whole arrays
    # resident in VMEM.  TODO(synk): when batch scales, add a grid over the
    # pixel/row axis with dimension_semantics=("parallel",) and size tiles for
    # v7x's 64 MiB VMEM.
    return pl.pallas_call(
        kernel,
        out_shape=jax.ShapeDtypeStruct(out_shape, jnp.float32),
        in_specs=[_vmem() for _ in args],
        out_specs=_vmem(),
    )(*args)


# ---------------- parameters -------------------------------------------------

def init_params(key):
    """Deterministic synthetic parameters, stored in the layouts the fused
    kernels consume (conv weights transposed, 1x1 conv of the conv2 block
    pre-expanded to a block-diagonal matrix at init time, host-side)."""
    def nrm(k, shape, scale=0.1):
        return (scale * jax.random.normal(k, shape)).astype(jnp.float32)

    ks = jax.random.split(key, 16)
    lin_in_feats = C2_CHANNELS[1] * 5 * 5            # 400 (dim2P = 5 for 28x28 input)
    c2_1_w = nrm(ks[3], (R1_C2, C2_CHANNELS[0]))     # 1x1 conv weight (cout, cin)
    p = {
        # conv1 block (feature-major / transposed layouts)
        "c1_1_wt": nrm(ks[0], (R_C1, C1_KERNEL * C1_KERNEL)),            # (4, 25), cols (kh,kw)
        "c1_2_wt": nrm(ks[1], (C1_CHANNELS, R_C1)),                      # (6, 4)
        "c1_2_b": nrm(ks[2], (C1_CHANNELS, 1)),
        # conv2 block
        "c2_1_bwt": jnp.kron(jnp.eye(C2_KERNEL * C2_KERNEL, dtype=jnp.float32),
                             c2_1_w),                                    # (200, 150)
        "c2_2_wt": nrm(ks[4], (R2_C2, C2_KERNEL * C2_KERNEL * R1_C2)),   # (8, 200), cols (kh,kw,ci)
        "c2_3_wt": nrm(ks[5], (C2_CHANNELS[1], R2_C2)),                  # (16, 8)
        "c2_3_b": nrm(ks[6], (C2_CHANNELS[1], 1)),
        # FC stack, (in, out); l1_1 rows already in PyTorch flatten order (c, y, x)
        "l1_1_w": nrm(ks[7], (lin_in_feats, R1_L1)),
        "l1_2_w": nrm(ks[8], (R1_L1, R2_L1)),
        "l1_3_w": nrm(ks[9], (R2_L1, L1_FEATURES)),
        "l1_3_b": nrm(ks[10], (1, L1_FEATURES)),
        "l2_1_w": nrm(ks[11], (L1_FEATURES, R_L2)),
        "l2_2_w": nrm(ks[12], (R_L2, L2_FEATURES)),
        "l2_2_b": nrm(ks[13], (1, L2_FEATURES)),
        "l_out_w": nrm(ks[14], (L2_FEATURES, L_OUT_FEATURES)),
        "l_out_b": nrm(ks[15], (1, L_OUT_FEATURES)),
    }
    return p


# ---------------- forward -----------------------------------------------------

def netdec_forward(params, x_nchw, sample_num=0):
    # TODO(synk): timing_dec[sample_num, k] = process_time() host-side timing
    # side effects have no device equivalent; `sample_num` is accepted and ignored.
    del sample_num
    x = x_nchw.astype(jnp.float32)
    n = x.shape[0]
    h1 = conv_dim(x.shape[2], C1_KERNEL, 1, C1_PADDING)   # 28
    h1p = h1 // 2                                         # 14
    h2 = conv_dim(h1p, C2_KERNEL, 1, C2_PADDING)          # 10
    h2p = h2 // 2                                         # 5

    # ---- conv1 block: relu(c1_1) -> relu(c1_2) (one fused kernel) ----
    xp = jnp.pad(x[:, 0], ((0, 0), (C1_PADDING,) * 2, (C1_PADDING,) * 2))  # (N, 32, 32)
    # im2col^T (XLA glue): rows = (kh, kw), cols = (n, y, x)  -> lane-dense kernel input
    p1t = jnp.stack(
        [xp[:, kh:kh + h1, kw:kw + h1].reshape(n * h1 * h1)
         for kh in range(C1_KERNEL) for kw in range(C1_KERNEL)], axis=0)   # (25, N*784)
    h = _call(_conv1_kernel, (C1_CHANNELS, n * h1 * h1),
              p1t, params["c1_1_wt"], params["c1_2_wt"], params["c1_2_b"]) # (6, N*784)

    # 2x2 max pool (tiny XLA glue: index plumbing + max)
    h = h.reshape(C1_CHANNELS, n, h1p, 2, h1p, 2).max(axis=(3, 5))         # (6, N, 14, 14)

    # ---- conv2 block: relu(c2_1) -> relu(c2_2) -> relu(c2_3) (one fused kernel) ----
    # im2col^T of the pooled map, rows ordered (kh, kw, ci) to match c2_2's layout
    p2t = jnp.concatenate(
        [h[:, :, kh:kh + h2, kw:kw + h2].reshape(C1_CHANNELS, n * h2 * h2)
         for kh in range(C2_KERNEL) for kw in range(C2_KERNEL)], axis=0)   # (150, N*100)
    g = _call(_conv2_kernel, (C2_CHANNELS[1], n * h2 * h2),
              p2t, params["c2_1_bwt"], params["c2_2_wt"],
              params["c2_3_wt"], params["c2_3_b"])                         # (16, N*100)

    g = g.reshape(C2_CHANNELS[1], n, h2p, 2, h2p, 2).max(axis=(3, 5))      # (16, N, 5, 5)
    # flatten in PyTorch NCHW order (c, y, x); tiny (N*400-element) transpose
    flat = jnp.transpose(g, (1, 0, 2, 3)).reshape(n, -1)                   # (N, 400)

    # ---- fully-connected stack + softmax (one fused kernel) ----
    out = _call(_fc_kernel, (n, L_OUT_FEATURES),
                flat,
                params["l1_1_w"], params["l1_2_w"], params["l1_3_w"], params["l1_3_b"],
                params["l2_1_w"], params["l2_2_w"], params["l2_2_b"],
                params["l_out_w"], params["l_out_b"])
    return out                                                             # (N, 10)


if __name__ == "__main__":
    key = jax.random.PRNGKey(0)
    pkey, xkey = jax.random.split(key)
    params = init_params(pkey)
    x = jax.random.normal(xkey, (2, 1, 28, 28), dtype=jnp.float32)  # NCHW, MNIST-like

    out = jax.jit(netdec_forward)(params, x)
    out = jax.block_until_ready(out)

    assert out.shape == (2, 10)
    assert bool(jnp.all(jnp.isfinite(out)))
    # softmax rows sum to ~1 (approx reciprocal on the EUP has ~1e-3 rel. error)
    assert bool(jnp.allclose(jnp.sum(out, axis=1), 1.0, atol=1e-2))
    print("KERNEL_OK")
</pallas_src>

<mosaic_0001>
module attributes {stable_mosaic.version = 11 : i64} {
  func.func @_conv1_kernel(%arg0: memref<25x1568xf32, #tpu.memory_space<vmem>>, %arg1: memref<4x25xf32, #tpu.memory_space<vmem>>, %arg2: memref<6x4xf32, #tpu.memory_space<vmem>>, %arg3: memref<6x1xf32, #tpu.memory_space<vmem>>, %arg4: memref<6x1568xf32, #tpu.memory_space<vmem>>) attributes {dimension_semantics = [], scalar_prefetch = 0 : i64, scratch_operands = 0 : i64, tpu.core_type = #tpu.core_type<tc>} {
    %c0 = arith.constant 0 : index
    %c0_0 = arith.constant 0 : index
    %0 = vector.load %arg1[%c0, %c0_0] : memref<4x25xf32, #tpu.memory_space<vmem>>, vector<4x25xf32>
    %c0_1 = arith.constant 0 : index
    %c0_2 = arith.constant 0 : index
    %1 = vector.load %arg0[%c0_1, %c0_2] : memref<25x1568xf32, #tpu.memory_space<vmem>>, vector<25x1568xf32>
    %cst = arith.constant dense<0.000000e+00> : vector<4x1568xf32>
    %2 = tpu.matmul %0, %1, %cst {dimension_numbers = #tpu.dot_dimension_numbers<[1], [0], [0], [1], [0, 0, 1, 1], [], []>} : vector<4x25xf32>, vector<25x1568xf32>, vector<4x1568xf32> -> vector<4x1568xf32>
    %cst_3 = arith.constant 0.000000e+00 : f32
    %3 = vector.broadcast %cst_3 : f32 to vector<4x1568xf32>
    %4 = arith.maximumf %2, %3 : vector<4x1568xf32>
    %c0_4 = arith.constant 0 : index
    %c0_5 = arith.constant 0 : index
    %5 = vector.load %arg2[%c0_4, %c0_5] : memref<6x4xf32, #tpu.memory_space<vmem>>, vector<6x4xf32>
    %cst_6 = arith.constant dense<0.000000e+00> : vector<6x1568xf32>
    %6 = tpu.matmul %5, %4, %cst_6 {dimension_numbers = #tpu.dot_dimension_numbers<[1], [0], [0], [1], [0, 0, 1, 1], [], []>} : vector<6x4xf32>, vector<4x1568xf32>, vector<6x1568xf32> -> vector<6x1568xf32>
    %c0_7 = arith.constant 0 : index
    %c0_8 = arith.constant 0 : index
    %7 = vector.load %arg3[%c0_7, %c0_8] : memref<6x1xf32, #tpu.memory_space<vmem>>, vector<6x1xf32>
    %8 = vector.broadcast %7 : vector<6x1xf32> to vector<6x1568xf32>
    %9 = arith.addf %6, %8 : vector<6x1568xf32>
    %cst_9 = arith.constant 0.000000e+00 : f32
    %10 = vector.broadcast %cst_9 : f32 to vector<6x1568xf32>
    %11 = arith.maximumf %9, %10 : vector<6x1568xf32>
    %c0_10 = arith.constant 0 : index
    %c0_11 = arith.constant 0 : index
    %12 = vector.load %arg4[%c0_10, %c0_11] : memref<6x1568xf32, #tpu.memory_space<vmem>>, vector<6x1568xf32>
    tpu.vector_store %arg4[%c0_10, %c0_11], %11 {strides = array<i32>} : memref<6x1568xf32, #tpu.memory_space<vmem>>, vector<6x1568xf32>,
    return
  }
}

module attributes {stable_mosaic.version = 11 : i64} {
  func.func @_conv2_kernel(%arg0: memref<150x200xf32, #tpu.memory_space<vmem>>, %arg1: memref<200x150xf32, #tpu.memory_space<vmem>>, %arg2: memref<8x200xf32, #tpu.memory_space<vmem>>, %arg3: memref<16x8xf32, #tpu.memory_space<vmem>>, %arg4: memref<16x1xf32, #tpu.memory_space<vmem>>, %arg5: memref<16x200xf32, #tpu.memory_space<vmem>>) attributes {dimension_semantics = [], scalar_prefetch = 0 : i64, scratch_operands = 0 : i64, tpu.core_type = #tpu.core_type<tc>} {
    %c0 = arith.constant 0 : index
    %c0_0 = arith.constant 0 : index
    %0 = vector.load %arg1[%c0, %c0_0] : memref<200x150xf32, #tpu.memory_space<vmem>>, vector<200x150xf32>
    %c0_1 = arith.constant 0 : index
    %c0_2 = arith.constant 0 : index
    %1 = vector.load %arg0[%c0_1, %c0_2] : memref<150x200xf32, #tpu.memory_space<vmem>>, vector<150x200xf32>
    %cst = arith.constant dense<0.000000e+00> : vector<200x200xf32>
    %2 = tpu.matmul %0, %1, %cst {dimension_numbers = #tpu.dot_dimension_numbers<[1], [0], [0], [1], [0, 0, 1, 1], [], []>} : vector<200x150xf32>, vector<150x200xf32>, vector<200x200xf32> -> vector<200x200xf32>
    %cst_3 = arith.constant 0.000000e+00 : f32
    %3 = vector.broadcast %cst_3 : f32 to vector<200x200xf32>
    %4 = arith.maximumf %2, %3 : vector<200x200xf32>
    %c0_4 = arith.constant 0 : index
    %c0_5 = arith.constant 0 : index
    %5 = vector.load %arg2[%c0_4, %c0_5] : memref<8x200xf32, #tpu.memory_space<vmem>>, vector<8x200xf32>
    %cst_6 = arith.constant dense<0.000000e+00> : vector<8x200xf32>
    %6 = tpu.matmul %5, %4, %cst_6 {dimension_numbers = #tpu.dot_dimension_numbers<[1], [0], [0], [1], [0, 0, 1, 1], [], []>} : vector<8x200xf32>, vector<200x200xf32>, vector<8x200xf32> -> vector<8x200xf32>
    %cst_7 = arith.constant 0.000000e+00 : f32
    %7 = vector.broadcast %cst_7 : f32 to vector<8x200xf32>
    %8 = arith.maximumf %6, %7 : vector<8x200xf32>
    %c0_8 = arith.constant 0 : index
    %c0_9 = arith.constant 0 : index
    %9 = vector.load %arg3[%c0_8, %c0_9] : memref<16x8xf32, #tpu.memory_space<vmem>>, vector<16x8xf32>
    %cst_10 = arith.constant dense<0.000000e+00> : vector<16x200xf32>
    %10 = tpu.matmul %9, %8, %cst_10 {dimension_numbers = #tpu.dot_dimension_numbers<[1], [0], [0], [1], [0, 0, 1, 1], [], []>} : vector<16x8xf32>, vector<8x200xf32>, vector<16x200xf32> -> vector<16x200xf32>
    %c0_11 = arith.constant 0 : index
    %c0_12 = arith.constant 0 : index
    %11 = vector.load %arg4[%c0_11, %c0_12] : memref<16x1xf32, #tpu.memory_space<vmem>>, vector<16x1xf32>
    %12 = vector.broadcast %11 : vector<16x1xf32> to vector<16x200xf32>
    %13 = arith.addf %10, %12 : vector<16x200xf32>
    %cst_13 = arith.constant 0.000000e+00 : f32
    %14 = vector.broadcast %cst_13 : f32 to vector<16x200xf32>
    %15 = arith.maximumf %13, %14 : vector<16x200xf32>
    %c0_14 = arith.constant 0 : index
    %c0_15 = arith.constant 0 : index
    %16 = vector.load %arg5[%c0_14, %c0_15] : memref<16x200xf32, #tpu.memory_space<vmem>>, vector<16x200xf32>
    tpu.vector_store %arg5[%c0_14, %c0_15], %15 {strides = array<i32>} : memref<16x200xf32, #tpu.memory_space<vmem>>, vector<16x200xf32>,
    return
  }
}

module attributes {stable_mosaic.version = 11 : i64} {
  func.func @_fc_kernel(%arg0: memref<2x400xf32, #tpu.memory_space<vmem>>, %arg1: memref<400x64xf32, #tpu.memory_space<vmem>>, %arg2: memref<64x48xf32, #tpu.memory_space<vmem>>, %arg3: memref<48x120xf32, #tpu.memory_space<vmem>>, %arg4: memref<1x120xf32, #tpu.memory_space<vmem>>, %arg5: memref<120x32xf32, #tpu.memory_space<vmem>>, %arg6: memref<32x84xf32, #tpu.memory_space<vmem>>, %arg7: memref<1x84xf32, #tpu.memory_space<vmem>>, %arg8: memref<84x10xf32, #tpu.memory_space<vmem>>, %arg9: memref<1x10xf32, #tpu.memory_space<vmem>>, %arg10: memref<2x10xf32, #tpu.memory_space<vmem>>) attributes {dimension_semantics = [], scalar_prefetch = 0 : i64, scratch_operands = 0 : i64, tpu.core_type = #tpu.core_type<tc>} {
    %c0 = arith.constant 0 : index
    %c0_0 = arith.constant 0 : index
    %0 = vector.load %arg0[%c0, %c0_0] : memref<2x400xf32, #tpu.memory_space<vmem>>, vector<2x400xf32>
    %c0_1 = arith.constant 0 : index
    %c0_2 = arith.constant 0 : index
    %1 = vector.load %arg1[%c0_1, %c0_2] : memref<400x64xf32, #tpu.memory_space<vmem>>, vector<400x64xf32>
    %cst = arith.constant dense<0.000000e+00> : vector<2x64xf32>
    %2 = tpu.matmul %0, %1, %cst {dimension_numbers = #tpu.dot_dimension_numbers<[1], [0], [0], [1], [0, 0, 1, 1], [], []>} : vector<2x400xf32>, vector<400x64xf32>, vector<2x64xf32> -> vector<2x64xf32>
    %cst_3 = arith.constant 0.000000e+00 : f32
    %3 = vector.broadcast %cst_3 : f32 to vector<2x64xf32>
    %4 = arith.maximumf %2, %3 : vector<2x64xf32>
    %c0_4 = arith.constant 0 : index
    %c0_5 = arith.constant 0 : index
    %5 = vector.load %arg2[%c0_4, %c0_5] : memref<64x48xf32, #tpu.memory_space<vmem>>, vector<64x48xf32>
    %cst_6 = arith.constant dense<0.000000e+00> : vector<2x48xf32>
    %6 = tpu.matmul %4, %5, %cst_6 {dimension_numbers = #tpu.dot_dimension_numbers<[1], [0], [0], [1], [0, 0, 1, 1], [], []>} : vector<2x64xf32>, vector<64x48xf32>, vector<2x48xf32> -> vector<2x48xf32>
    %cst_7 = arith.constant 0.000000e+00 : f32
    %7 = vector.broadcast %cst_7 : f32 to vector<2x48xf32>
    %8 = arith.maximumf %6, %7 : vector<2x48xf32>
    %c0_8 = arith.constant 0 : index
    %c0_9 = arith.constant 0 : index
    %9 = vector.load %arg3[%c0_8, %c0_9] : memref<48x120xf32, #tpu.memory_space<vmem>>, vector<48x120xf32>
    %cst_10 = arith.constant dense<0.000000e+00> : vector<2x120xf32>
    %10 = tpu.matmul %8, %9, %cst_10 {dimension_numbers = #tpu.dot_dimension_numbers<[1], [0], [0], [1], [0, 0, 1, 1], [], []>} : vector<2x48xf32>, vector<48x120xf32>, vector<2x120xf32> -> vector<2x120xf32>
    %c0_11 = arith.constant 0 : index
    %c0_12 = arith.constant 0 : index
    %11 = vector.load %arg4[%c0_11, %c0_12] : memref<1x120xf32, #tpu.memory_space<vmem>>, vector<1x120xf32>
    %12 = vector.broadcast %11 : vector<1x120xf32> to vector<2x120xf32>
    %13 = arith.addf %10, %12 : vector<2x120xf32>
    %cst_13 = arith.constant 0.000000e+00 : f32
    %14 = vector.broadcast %cst_13 : f32 to vector<2x120xf32>
    %15 = arith.maximumf %13, %14 : vector<2x120xf32>
    %c0_14 = arith.constant 0 : index
    %c0_15 = arith.constant 0 : index
    %16 = vector.load %arg5[%c0_14, %c0_15] : memref<120x32xf32, #tpu.memory_space<vmem>>, vector<120x32xf32>
    %cst_16 = arith.constant dense<0.000000e+00> : vector<2x32xf32>
    %17 = tpu.matmul %15, %16, %cst_16 {dimension_numbers = #tpu.dot_dimension_numbers<[1], [0], [0], [1], [0, 0, 1, 1], [], []>} : vector<2x120xf32>, vector<120x32xf32>, vector<2x32xf32> -> vector<2x32xf32>
    %cst_17 = arith.constant 0.000000e+00 : f32
    %18 = vector.broadcast %cst_17 : f32 to vector<2x32xf32>
    %19 = arith.maximumf %17, %18 : vector<2x32xf32>
    %c0_18 = arith.constant 0 : index
    %c0_19 = arith.constant 0 : index
    %20 = vector.load %arg6[%c0_18, %c0_19] : memref<32x84xf32, #tpu.memory_space<vmem>>, vector<32x84xf32>
    %cst_20 = arith.constant dense<0.000000e+00> : vector<2x84xf32>
    %21 = tpu.matmul %19, %20, %cst_20 {dimension_numbers = #tpu.dot_dimension_numbers<[1], [0], [0], [1], [0, 0, 1, 1], [], []>} : vector<2x32xf32>, vector<32x84xf32>, vector<2x84xf32> -> vector<2x84xf32>
    %c0_21 = arith.constant 0 : index
    %c0_22 = arith.constant 0 : index
    %22 = vector.load %arg7[%c0_21, %c0_22] : memref<1x84xf32, #tpu.memory_space<vmem>>, vector<1x84xf32>
    %23 = vector.broadcast %22 : vector<1x84xf32> to vector<2x84xf32>
    %24 = arith.addf %21, %23 : vector<2x84xf32>
    %cst_23 = arith.constant 0.000000e+00 : f32
    %25 = vector.broadcast %cst_23 : f32 to vector<2x84xf32>
    %26 = arith.maximumf %24, %25 : vector<2x84xf32>
    %c0_24 = arith.constant 0 : index
    %c0_25 = arith.constant 0 : index
    %27 = vector.load %arg8[%c0_24, %c0_25] : memref<84x10xf32, #tpu.memory_space<vmem>>, vector<84x10xf32>
    %cst_26 = arith.constant dense<0.000000e+00> : vector<2x10xf32>
    %28 = tpu.matmul %26, %27, %cst_26 {dimension_numbers = #tpu.dot_dimension_numbers<[1], [0], [0], [1], [0, 0, 1, 1], [], []>} : vector<2x84xf32>, vector<84x10xf32>, vector<2x10xf32> -> vector<2x10xf32>
    %c0_27 = arith.constant 0 : index
    %c0_28 = arith.constant 0 : index
    %29 = vector.load %arg9[%c0_27, %c0_28] : memref<1x10xf32, #tpu.memory_space<vmem>>, vector<1x10xf32>
    %30 = vector.broadcast %29 : vector<1x10xf32> to vector<2x10xf32>
    %31 = arith.addf %28, %30 : vector<2x10xf32>
    %cst_29 = arith.constant dense<0xFF800000> : vector<2xf32>
    %32 = vector.multi_reduction <maximumf>, %31, %cst_29 [1] : vector<2x10xf32> to vector<2xf32>
    %33 = vector.shape_cast %32 : vector<2xf32> to vector<2x1xf32>
    %34 = vector.broadcast %33 : vector<2x1xf32> to vector<2x10xf32>
    %35 = arith.subf %31, %34 : vector<2x10xf32>
    %36 = math.exp %35 : vector<2x10xf32>
    %cst_30 = arith.constant dense<0.000000e+00> : vector<2xf32>
    %37 = vector.multi_reduction <add>, %36, %cst_30 [1] : vector<2x10xf32> to vector<2xf32>
    %38 = vector.shape_cast %37 : vector<2xf32> to vector<2x1xf32>
    %39 = tpu.reciprocal %38 {approx = true} : vector<2x1xf32> -> vector<2x1xf32>
    %40 = vector.broadcast %39 : vector<2x1xf32> to vector<2x10xf32>
    %41 = arith.mulf %36, %40 : vector<2x10xf32>
    %c0_31 = arith.constant 0 : index
    %c0_32 = arith.constant 0 : index
    %42 = vector.load %arg10[%c0_31, %c0_32] : memref<2x10xf32, #tpu.memory_space<vmem>>, vector<2x10xf32>
    tpu.vector_store %arg10[%c0_31, %c0_32], %41 {strides = array<i32>} : memref<2x10xf32, #tpu.memory_space<vmem>>, vector<2x10xf32>,
    return
  }
}

</mosaic_0001>

<llo_original>
// kernel: netdec_forward.3
$region0: #{netdec_forward.3}
  #allocation0 [shape = 'u32[]', space=smem, size = 0x4, offset = 0x4, fixed_abs, tag = 'smem constant byte address 0x4 - core index']
  #allocation1 [shape = 'u32[72,128]{1,0:T(1,128)}', space=vmem, size = 0x9000, scoped, tag = 'internal scratch']
  %s0 = inlined_call_operand.vmem [shape: f32[25,1568], index: 0, kind: input, shape index: {}]
  %s1 = inlined_call_operand.vmem [shape: f32[4,25], index: 1, kind: input, shape index: {}]
  %s2 = inlined_call_operand.vmem [shape: f32[6,4], index: 2, kind: input, shape index: {}]
  %s3 = inlined_call_operand.vmem [shape: f32[6,1], index: 3, kind: input, shape index: {}]
  %s4 = inlined_call_operand.vmem [shape: f32[6,1568], index: 4, kind: output, shape index: {}]
  %s5 = sld [smem:[#allocation0]]
  $region26: #{netdec_forward.3} parent=0
    _
  %s7 = ssub.s32 1, %s5
  %s8 = scalar_select 0, %s7, %s5
  // Predicated region
  $region2: #{netdec_forward.3} parent=0 // pred_check
    _
  $region3: #{netdec_forward.3} parent=0 // pred_check_branch
    %10 = sbr.rel (0) target = $region5
  $region4: #{netdec_forward.3} parent=0 // pred_region
    _
  $region5: #{netdec_forward.3} parent=0 // pred_fallthru
    _
  // Predicated region
  $region6: #{netdec_forward.3} parent=0 // pred_check
    _
  $region7: #{netdec_forward.3} parent=0 // pred_check_branch
    %12 = sbr.rel (0) target = $region9
  $region8: #{netdec_forward.3} parent=0 // pred_region
    _
  $region9: #{netdec_forward.3} parent=0 // pred_fallthru
    _
  // Predicated region
  $region10: #{netdec_forward.3} parent=0 // pred_check
    _
  $region11: #{netdec_forward.3} parent=0 // pred_check_branch
    %14 = sbr.rel (0) target = $region13
  $region12: #{netdec_forward.3} parent=0 // pred_region
    _
  $region13: #{netdec_forward.3} parent=0 // pred_fallthru
    _
  // Predicated region
  $region14: #{netdec_forward.3} parent=0 // pred_check
    _
  $region15: #{netdec_forward.3} parent=0 // pred_check_branch
    %16 = sbr.rel (0) target = $region17
  $region16: #{netdec_forward.3} parent=0 // pred_region
    _
  $region17: #{netdec_forward.3} parent=0 // pred_fallthru
    _
  %v17 = vld [vmem:[%s1] sm:$0xf]
  %v18 = vld [vmem:[%s0] sm:$0xff]
  %v19 = vld [vmem:[%s0 + $0x8] sm:$0xff]
  %v20 = vld [vmem:[%s0 + $0x10] sm:$0xff]
  %v21 = vld [vmem:[%s0 + $0x18] sm:$0xff]
  %v22 = vld [vmem:[%s0 + $0x20] sm:$0xff]
  %v23 = vld [vmem:[%s0 + $0x28] sm:$0xff]
  %v24 = vld [vmem:[%s0 + $0x30] sm:$0xff]
  %v25 = vld [vmem:[%s0 + $0x38] sm:$0xff]
  %v26 = vld [vmem:[%s0 + $0x40] sm:$0xff]
  %v27 = vld [vmem:[%s0 + $0x48] sm:$0xff]
  %v28 = vld [vmem:[%s0 + $0x50] sm:$0xff]
  %v29 = vld [vmem:[%s0 + $0x58] sm:$0xff]
  %v30 = vld [vmem:[%s0 + $0x60] sm:$0xff]
  %v31 = vld [vmem:[%s0 + $0x68] sm:$0xff]
  %v32 = vld [vmem:[%s0 + $0x70] sm:$0xff]
  %v33 = vld [vmem:[%s0 + $0x78] sm:$0xff]
  %v34 = vld [vmem:[%s0 + $0x80] sm:$0xff]
  %v35 = vld [vmem:[%s0 + $0x88] sm:$0xff]
  %v36 = vld [vmem:[%s0 + $0x90] sm:$0xff]
  %v37 = vld [vmem:[%s0 + $0x98] sm:$0xff]
  %v38 = vld [vmem:[%s0 + $0xa0] sm:$0xff]
  %v39 = vld [vmem:[%s0 + $0xa8] sm:$0xff]
  %v40 = vld [vmem:[%s0 + $0xb0] sm:$0xff]
  %v41 = vld [vmem:[%s0 + $0xb8] sm:$0xff]
  %v42 = vld [vmem:[%s0 + $0xc0] sm:$0xff]
  %v43 = vld [vmem:[%s0 + $0xc8] sm:$0xff]
  %v44 = vld [vmem:[%s0 + $0xd0] sm:$0xff]
  %v45 = vld [vmem:[%s0 + $0xd8] sm:$0xff]
  %v46 = vld [vmem:[%s0 + $0xe0] sm:$0xff]
  %v47 = vld [vmem:[%s0 + $0xe8] sm:$0xff]
  %v48 = vld [vmem:[%s0 + $0xf0] sm:$0xff]
  %v49 = vld [vmem:[%s0 + $0xf8] sm:$0xff]
  %v50 = vld [vmem:[%s0 + $0x100] sm:$0xff]
  %v51 = vld [vmem:[%s0 + $0x108] sm:$0xff]
  %v52 = vld [vmem:[%s0 + $0x110] sm:$0xff]
  %v53 = vld [vmem:[%s0 + $0x118] sm:$0xff]
  %v54 = vld [vmem:[%s0 + $0x120] sm:$0xff]
  %v55 = vld [vmem:[%s0 + $0x128] sm:$0xff]
  %v56 = vld [vmem:[%s0 + $0x130] sm:$0xff]
  %v57 = vld [vmem:[%s0 + $0x138] sm:$0x1]
  %v58 = vld [vmem:[%s0 + $0x140] sm:$0x1]
  %v59 = vld [vmem:[%s0 + $0x148] sm:$0x1]
  %v60 = vld [vmem:[%s0 + $0x150] sm:$0x1]
  %v61 = vld [vmem:[%s0 + $0x158] sm:$0x1]
  %v62 = vld [vmem:[%s0 + $0x160] sm:$0x1]
  %v63 = vld [vmem:[%s0 + $0x168] sm:$0x1]
  %v64 = vld [vmem:[%s0 + $0x170] sm:$0x1]
  %v65 = vld [vmem:[%s0 + $0x178] sm:$0x1]
  %v66 = vld [vmem:[%s0 + $0x180] sm:$0x1]
  %v67 = vld [vmem:[%s0 + $0x188] sm:$0x1]
  %v68 = vld [vmem:[%s0 + $0x190] sm:$0x1]
  %v69 = vld [vmem:[%s0 + $0x198] sm:$0x1]
  %vm70 = vcmask 203776
  %v72 = vsel %vm70, %v17, 0
  %vm74 = vcmask 1040384
  %v76 = vsel %vm74, %v57, 0
  %v79 = vsel %vm74, %v58, 0
  %v82 = vsel %vm74, %v59, 0
  %v85 = vsel %vm74, %v60, 0
  %v88 = vsel %vm74, %v61, 0
  %v91 = vsel %vm74, %v62, 0
  %v94 = vsel %vm74, %v63, 0
  %v97 = vsel %vm74, %v64, 0
  %v100 = vsel %vm74, %v65, 0
  %v103 = vsel %vm74, %v66, 0
  %v106 = vsel %vm74, %v67, 0
  %v109 = vsel %vm74, %v68, 0
  %v112 = vsel %vm74, %v69, 0
  %114 = vmatpush.msra.mxu0 0.0
  %115 = vmatpush.msra.mxu0 0.0
  %116 = vmatpush.msra.mxu0 0.0
  %117 = vmatpush.msra.mxu0 0.0
  %118 = vmatpush.msra.mxu0 0.0
  %119 = vmatpush.msra.mxu0 0.0
  %120 = vmatpush.msra.mxu0 0.0
  %121 = vmatpush.msra.mxu0 0.0
  %122 = vmatpush.msra.mxu0 0.0
  %123 = vmatpush.msra.mxu0 0.0
  %124 = vmatpush.msra.mxu0 0.0
  %125 = vmatpush.msra.mxu0 0.0
  %126 = vmatpush.msra.mxu0 %v76
  %127 = vmatpush.msra.mxu0 %v44
  %128 = vmatpush.msra.mxu0 %v31
  %129 = vmatpush.msra.mxu0 %v18
  %130 = vmatmul.f32.gmra.mxu0 %v72
  %v131 = vpop.f32.mrf.mxu0
  %v132 = vadd.f32 0.0, %v131
  %133 = vdwg.mxu0
  %134 = vmatpush.msra.mxu0 0.0
  %135 = vmatpush.msra.mxu0 0.0
  %136 = vmatpush.msra.mxu0 0.0
  %137 = vmatpush.msra.mxu0 0.0
  %138 = vmatpush.msra.mxu0 0.0
  %139 = vmatpush.msra.mxu0 0.0
  %140 = vmatpush.msra.mxu0 0.0
  %141 = vmatpush.msra.mxu0 0.0
  %142 = vmatpush.msra.mxu0 0.0
  %143 = vmatpush.msra.mxu0 0.0
  %144 = vmatpush.msra.mxu0 0.0
  %145 = vmatpush.msra.mxu0 0.0
  %146 = vmatpush.msra.mxu0 %v79
  %147 = vmatpush.msra.mxu0 %v45
  %148 = vmatpush.msra.mxu0 %v32
  %149 = vmatpush.msra.mxu0 %v19
  %150 = vmatmul.f32.gmra.mxu0 %v72
  %v151 = vpop.f32.mrf.mxu0
  %v152 = vadd.f32 0.0, %v151
  %153 = vdwg.mxu0
  %154 = vmatpush.msra.mxu0 0.0
  %155 = vmatpush.msra.mxu0 0.0
  %156 = vmatpush.msra.mxu0 0.0
  %157 = vmatpush.msra.mxu0 0.0
  %158 = vmatpush.msra.mxu0 0.0
  %159 = vmatpush.msra.mxu0 0.0
  %160 = vmatpush.msra.mxu0 0.0
  %161 = vmatpush.msra.mxu0 0.0
  %162 = vmatpush.msra.mxu0 0.0
  %163 = vmatpush.msra.mxu0 0.0
  %164 = vmatpush.msra.mxu0 0.0
  %165 = vmatpush.msra.mxu0 0.0
  %166 = vmatpush.msra.mxu0 %v82
  %167 = vmatpush.msra.mxu0 %v46
  %168 = vmatpush.msra.mxu0 %v33
  %169 = vmatpush.msra.mxu0 %v20
  %170 = vmatmul.f32.gmra.mxu0 %v72
  %v171 = vpop.f32.mrf.mxu0
  %v172 = vadd.f32 0.0, %v171
  %173 = vdwg.mxu0
  %174 = vmatpush.msra.mxu0 0.0
  %175 = vmatpush.msra.mxu0 0.0
  %176 = vmatpush.msra.mxu0 0.0
  %177 = vmatpush.msra.mxu0 0.0
  %178 = vmatpush.msra.mxu0 0.0
  %179 = vmatpush.msra.mxu0 0.0
  %180 = vmatpush.msra.mxu0 0.0
  %181 = vmatpush.msra.mxu0 0.0
  %182 = vmatpush.msra.mxu0 0.0
  %183 = vmatpush.msra.mxu0 0.0
  %184 = vmatpush.msra.mxu0 0.0
  %185 = vmatpush.msra.mxu0 0.0
  %186 = vmatpush.msra.mxu0 %v85
  %187 = vmatpush.msra.mxu0 %v47
  %188 = vmatpush.msra.mxu0 %v34
  %189 = vmatpush.msra.mxu0 %v21
  %190 = vmatmul.f32.gmra.mxu0 %v72
  %v191 = vpop.f32.mrf.mxu0
  %v192 = vadd.f32 0.0, %v191
  %193 = vdwg.mxu0
  %194 = vmatpush.msra.mxu0 0.0
  %195 = vmatpush.msra.mxu0 0.0
  %196 = vmatpush.msra.mxu0 0.0
  %197 = vmatpush.msra.mxu0 0.0
  %198 = vmatpush.msra.mxu0 0.0
  %199 = vmatpush.msra.mxu0 0.0
  %200 = vmatpush.msra.mxu0 0.0
  %201 = vmatpush.msra.mxu0 0.0
  %202 = vmatpush.msra.mxu0 0.0
  %203 = vmatpush.msra.mxu0 0.0
  %204 = vmatpush.msra.mxu0 0.0
  %205 = vmatpush.msra.mxu0 0.0
  %206 = vmatpush.msra.mxu0 %v88
  %207 = vmatpush.msra.mxu0 %v48
  %208 = vmatpush.msra.mxu0 %v35
  %209 = vmatpush.msra.mxu0 %v22
  %210 = vmatmul.f32.gmra.mxu0 %v72
  %v211 = vpop.f32.mrf.mxu0
  %v212 = vadd.f32 0.0, %v211
  %213 = vdwg.mxu0
  %214 = vmatpush.msra.mxu0 0.0
  %215 = vmatpush.msra.mxu0 0.0
  %216 = vmatpush.msra.mxu0 0.0
  %217 = vmatpush.msra.mxu0 0.0
  %218 = vmatpush.msra.mxu0 0.0
  %219 = vmatpush.msra.mxu0 0.0
  %220 = vmatpush.msra.mxu0 0.0
  %221 = vmatpush.msra.mxu0 0.0
  %222 = vmatpush.msra.mxu0 0.0
  %223 = vmatpush.msra.mxu0 0.0
  %224 = vmatpush.msra.mxu0 0.0
  %225 = vmatpush.msra.mxu0 0.0
  %226 = vmatpush.msra.mxu0 %v91
  %227 = vmatpush.msra.mxu0 %v49
  %228 = vmatpush.msra.mxu0 %v36
  %229 = vmatpush.msra.mxu0 %v23
  %230 = vmatmul.f32.gmra.mxu0 %v72
  %v231 = vpop.f32.mrf.mxu0
  %v232 = vadd.f32 0.0, %v231
  %233 = vdwg.mxu0
  %234 = vmatpush.msra.mxu0 0.0
  %235 = vmatpush.msra.mxu0 0.0
  %236 = vmatpush.msra.mxu0 0.0
  %237 = vmatpush.msra.mxu0 0.0
  %238 = vmatpush.msra.mxu0 0.0
  %239 = vmatpush.msra.mxu0 0.0
  %240 = vmatpush.msra.mxu0 0.0
  %241 = vmatpush.msra.mxu0 0.0
  %242 = vmatpush.msra.mxu0 0.0
  %243 = vmatpush.msra.mxu0 0.0
  %244 = vmatpush.msra.mxu0 0.0
  %245 = vmatpush.msra.mxu0 0.0
  %246 = vmatpush.msra.mxu0 %v94
  %247 = vmatpush.msra.mxu0 %v50
  %248 = vmatpush.msra.mxu0 %v37
  %249 = vmatpush.msra.mxu0 %v24
  %250 = vmatmul.f32.gmra.mxu0 %v72
  %v251 = vpop.f32.mrf.mxu0
  %v252 = vadd.f32 0.0, %v251
  %253 = vdwg.mxu0
  %254 = vmatpush.msra.mxu0 0.0
  %255 = vmatpush.msra.mxu0 0.0
  %256 = vmatpush.msra.mxu0 0.0
  %257 = vmatpush.msra.mxu0 0.0
  %258 = vmatpush.msra.mxu0 0.0
  %259 = vmatpush.msra.mxu0 0.0
  %260 = vmatpush.msra.mxu0 0.0
  %261 = vmatpush.msra.mxu0 0.0
  %262 = vmatpush.msra.mxu0 0.0
  %263 = vmatpush.msra.mxu0 0.0
  %264 = vmatpush.msra.mxu0 0.0
  %265 = vmatpush.msra.mxu0 0.0
  %266 = vmatpush.msra.mxu0 %v97
  %267 = vmatpush.msra.mxu0 %v51
  %268 = vmatpush.msra.mxu0 %v38
  %269 = vmatpush.msra.mxu0 %v25
  %270 = vmatmul.f32.gmra.mxu0 %v72
  %v271 = vpop.f32.mrf.mxu0
  %v272 = vadd.f32 0.0, %v271
  %273 = vdwg.mxu0
  %274 = vmatpush.msra.mxu0 0.0
  %275 = vmatpush.msra.mxu0 0.0
  %276 = vmatpush.msra.mxu0 0.0
  %277 = vmatpush.msra.mxu0 0.0
  %278 = vmatpush.msra.mxu0 0.0
  %279 = vmatpush.msra.mxu0 0.0
  %280 = vmatpush.msra.mxu0 0.0
  %281 = vmatpush.msra.mxu0 0.0
  %282 = vmatpush.msra.mxu0 0.0
  %283 = vmatpush.msra.mxu0 0.0
  %284 = vmatpush.msra.mxu0 0.0
  %285 = vmatpush.msra.mxu0 0.0
  %286 = vmatpush.msra.mxu0 %v100
  %287 = vmatpush.msra.mxu0 %v52
  %288 = vmatpush.msra.mxu0 %v39
  %289 = vmatpush.msra.mxu0 %v26
  %290 = vmatmul.f32.gmra.mxu0 %v72
  %v291 = vpop.f32.mrf.mxu0
  %v292 = vadd.f32 0.0, %v291
  %293 = vdwg.mxu0
  %294 = vmatpush.msra.mxu0 0.0
  %295 = vmatpush.msra.mxu0 0.0
  %296 = vmatpush.msra.mxu0 0.0
  %297 = vmatpush.msra.mxu0 0.0
  %298 = vmatpush.msra.mxu0 0.0
  %299 = vmatpush.msra.mxu0 0.0
  %300 = vmatpush.msra.mxu0 0.0
  %301 = vmatpush.msra.mxu0 0.0
  %302 = vmatpush.msra.mxu0 0.0
  %303 = vmatpush.msra.mxu0 0.0
  %304 = vmatpush.msra.mxu0 0.0
  %305 = vmatpush.msra.mxu0 0.0
  %306 = vmatpush.msra.mxu0 %v103
  %307 = vmatpush.msra.mxu0 %v53
  %308 = vmatpush.msra.mxu0 %v40
  %309 = vmatpush.msra.mxu0 %v27
  %310 = vmatmul.f32.gmra.mxu0 %v72
  %v311 = vpop.f32.mrf.mxu0
  %v312 = vadd.f32 0.0, %v311
  %313 = vdwg.mxu0
  %314 = vmatpush.msra.mxu0 0.0
  %315 = vmatpush.msra.mxu0 0.0
  %316 = vmatpush.msra.mxu0 0.0
  %317 = vmatpush.msra.mxu0 0.0
  %318 = vmatpush.msra.mxu0 0.0
  %319 = vmatpush.msra.mxu0 0.0
  %320 = vmatpush.msra.mxu0 0.0
  %321 = vmatpush.msra.mxu0 0.0
  %322 = vmatpush.msra.mxu0 0.0
  %323 = vmatpush.msra.mxu0 0.0
  %324 = vmatpush.msra.mxu0 0.0
  %325 = vmatpush.msra.mxu0 0.0
  %326 = vmatpush.msra.mxu0 %v106
  %327 = vmatpush.msra.mxu0 %v54
  %328 = vmatpush.msra.mxu0 %v41
  %329 = vmatpush.msra.mxu0 %v28
  %330 = vmatmul.f32.gmra.mxu0 %v72
  %v331 = vpop.f32.mrf.mxu0
  %v332 = vadd.f32 0.0, %v331
  %333 = vdwg.mxu0
  %334 = vmatpush.msra.mxu0 0.0
  %335 = vmatpush.msra.mxu0 0.0
  %336 = vmatpush.msra.mxu0 0.0
  %337 = vmatpush.msra.mxu0 0.0
  %338 = vmatpush.msra.mxu0 0.0
  %339 = vmatpush.msra.mxu0 0.0
  %340 = vmatpush.msra.mxu0 0.0
  %341 = vmatpush.msra.mxu0 0.0
  %342 = vmatpush.msra.mxu0 0.0
  %343 = vmatpush.msra.mxu0 0.0
  %344 = vmatpush.msra.mxu0 0.0
  %345 = vmatpush.msra.mxu0 0.0
  %346 = vmatpush.msra.mxu0 %v109
  %347 = vmatpush.msra.mxu0 %v55
  %348 = vmatpush.msra.mxu0 %v42
  %349 = vmatpush.msra.mxu0 %v29
  %350 = vmatmul.f32.gmra.mxu0 %v72
  %v351 = vpop.f32.mrf.mxu0
  %v352 = vadd.f32 0.0, %v351
  %353 = vdwg.mxu0
  %354 = vmatpush.msra.mxu0 0.0
  %355 = vmatpush.msra.mxu0 0.0
  %356 = vmatpush.msra.mxu0 0.0
  %357 = vmatpush.msra.mxu0 0.0
  %358 = vmatpush.msra.mxu0 0.0
  %359 = vmatpush.msra.mxu0 0.0
  %360 = vmatpush.msra.mxu0 0.0
  %361 = vmatpush.msra.mxu0 0.0
  %362 = vmatpush.msra.mxu0 0.0
  %363 = vmatpush.msra.mxu0 0.0
  %364 = vmatpush.msra.mxu0 0.0
  %365 = vmatpush.msra.mxu0 0.0
  %366 = vmatpush.msra.mxu0 %v112
  %367 = vmatpush.msra.mxu0 %v56
  %368 = vmatpush.msra.mxu0 %v43
  %369 = vmatpush.msra.mxu0 %v30
  %370 = vmatmul.f32.gmra.mxu0 %v72
  %v371 = vpop.f32.mrf.mxu0
  %v372 = vadd.f32 0.0, %v371
  %373 = vdwg.mxu0
  %v374 = vmax.f32 %v132, 0.0
  %v375 = vmax.f32 %v152, 0.0
  %v376 = vmax.f32 %v172, 0.0
  %v377 = vmax.f32 %v192, 0.0
  %v378 = vmax.f32 %v212, 0.0
  %v379 = vmax.f32 %v232, 0.0
  %v380 = vmax.f32 %v252, 0.0
  %v381 = vmax.f32 %v272, 0.0
  %v382 = vmax.f32 %v292, 0.0
  %v383 = vmax.f32 %v312, 0.0
  %v384 = vmax.f32 %v332, 0.0
  %v385 = vmax.f32 %v352, 0.0
  %v386 = vmax.f32 %v372, 0.0
  %v387 = vld [vmem:[%s2] sm:$0x3f]
  %v388 = vld [vmem:[%s3] sm:$0x3f]
  %390 = vset.pattern.permute.xlu0 0
  %391 = vperm.xlu0 %390, %v388
  %v392 = vpop.permute.xlu0 %391
  %vm394 = vcmask 31744
  %v396 = vsel %vm394, %v387, 0
  %vm398 = vcmask 1043456
  %v400 = vsel %vm398, %v374, 0
  %v403 = vsel %vm398, %v375, 0
  %v406 = vsel %vm398, %v376, 0
  %v409 = vsel %vm398, %v377, 0
  %v412 = vsel %vm398, %v378, 0
  %v415 = vsel %vm398, %v379, 0
  %v418 = vsel %vm398, %v380, 0
  %v421 = vsel %vm398, %v381, 0
  %v424 = vsel %vm398, %v382, 0
  %v427 = vsel %vm398, %v383, 0
  %v430 = vsel %vm398, %v384, 0
  %v433 = vsel %vm398, %v385, 0
  %v436 = vsel %vm398, %v386, 0
  %438 = vmatpush.msra.mxu0 0.0
  %439 = vmatpush.msra.mxu0 0.0
  %440 = vmatpush.msra.mxu0 0.0
  %441 = vmatpush.msra.mxu0 0.0
  %442 = vmatpush.msra.mxu0 0.0
  %443 = vmatpush.msra.mxu0 0.0
  %444 = vmatpush.msra.mxu0 0.0
  %445 = vmatpush.msra.mxu0 0.0
  %446 = vmatpush.msra.mxu0 0.0
  %447 = vmatpush.msra.mxu0 0.0
  %448 = vmatpush.msra.mxu0 0.0
  %449 = vmatpush.msra.mxu0 0.0
  %450 = vmatpush.msra.mxu0 0.0
  %451 = vmatpush.msra.mxu0 0.0
  %452 = vmatpush.msra.mxu0 0.0
  %453 = vmatpush.msra.mxu0 %v400
  %454 = vmatmul.f32.gmra.mxu0 %v396
  %v455 = vpop.f32.mrf.mxu0
  %v456 = vadd.f32 %v392, %v455
  %457 = vdwg.mxu0
  %458 = vmatpush.msra.mxu0 0.0
  %459 = vmatpush.msra.mxu0 0.0
  %460 = vmatpush.msra.mxu0 0.0
  %461 = vmatpush.msra.mxu0 0.0
  %462 = vmatpush.msra.mxu0 0.0
  %463 = vmatpush.msra.mxu0 0.0
  %464 = vmatpush.msra.mxu0 0.0
  %465 = vmatpush.msra.mxu0 0.0
  %466 = vmatpush.msra.mxu0 0.0
  %467 = vmatpush.msra.mxu0 0.0
  %468 = vmatpush.msra.mxu0 0.0
  %469 = vmatpush.msra.mxu0 0.0
  %470 = vmatpush.msra.mxu0 0.0
  %471 = vmatpush.msra.mxu0 0.0
  %472 = vmatpush.msra.mxu0 0.0
  %473 = vmatpush.msra.mxu0 %v403
  %474 = vmatmul.f32.gmra.mxu0 %v396
  %v475 = vpop.f32.mrf.mxu0
  %v476 = vadd.f32 %v392, %v475
  %477 = vdwg.mxu0
  %478 = vmatpush.msra.mxu0 0.0
  %479 = vmatpush.msra.mxu0 0.0
  %480 = vmatpush.msra.mxu0 0.0
  %481 = vmatpush.msra.mxu0 0.0
  %482 = vmatpush.msra.mxu0 0.0
  %483 = vmatpush.msra.mxu0 0.0
  %484 = vmatpush.msra.mxu0 0.0
  %485 = vmatpush.msra.mxu0 0.0
  %486 = vmatpush.msra.mxu0 0.0
  %487 = vmatpush.msra.mxu0 0.0
  %488 = vmatpush.msra.mxu0 0.0
  %489 = vmatpush.msra.mxu0 0.0
  %490 = vmatpush.msra.mxu0 0.0
  %491 = vmatpush.msra.mxu0 0.0
  %492 = vmatpush.msra.mxu0 0.0
  %493 = vmatpush.msra.mxu0 %v406
  %494 = vmatmul.f32.gmra.mxu0 %v396
  %v495 = vpop.f32.mrf.mxu0
  %v496 = vadd.f32 %v392, %v495
  %497 = vdwg.mxu0
  %498 = vmatpush.msra.mxu0 0.0
  %499 = vmatpush.msra.mxu0 0.0
  %500 = vmatpush.msra.mxu0 0.0
  %501 = vmatpush.msra.mxu0 0.0
  %502 = vmatpush.msra.mxu0 0.0
  %503 = vmatpush.msra.mxu0 0.0
  %504 = vmatpush.msra.mxu0 0.0
  %505 = vmatpush.msra.mxu0 0.0
  %506 = vmatpush.msra.mxu0 0.0
  %507 = vmatpush.msra.mxu0 0.0
  %508 = vmatpush.msra.mxu0 0.0
  %509 = vmatpush.msra.mxu0 0.0
  %510 = vmatpush.msra.mxu0 0.0
  %511 = vmatpush.msra.mxu0 0.0
  %512 = vmatpush.msra.mxu0 0.0
  %513 = vmatpush.msra.mxu0 %v409
  %514 = vmatmul.f32.gmra.mxu0 %v396
  %v515 = vpop.f32.mrf.mxu0
  %v516 = vadd.f32 %v392, %v515
  %517 = vdwg.mxu0
  %518 = vmatpush.msra.mxu0 0.0
  %519 = vmatpush.msra.mxu0 0.0
  %520 = vmatpush.msra.mxu0 0.0
  %521 = vmatpush.msra.mxu0 0.0
  %522 = vmatpush.msra.mxu0 0.0
  %523 = vmatpush.msra.mxu0 0.0
  %524 = vmatpush.msra.mxu0 0.0
  %525 = vmatpush.msra.mxu0 0.0
  %526 = vmatpush.msra.mxu0 0.0
  %527 = vmatpush.msra.mxu0 0.0
  %528 = vmatpush.msra.mxu0 0.0
  %529 = vmatpush.msra.mxu0 0.0
  %530 = vmatpush.msra.mxu0 0.0
  %531 = vmatpush.msra.mxu0 0.0
  %532 = vmatpush.msra.mxu0 0.0
  %533 = vmatpush.msra.mxu0 %v412
  %534 = vmatmul.f32.gmra.mxu0 %v396
  %v535 = vpop.f32.mrf.mxu0
  %v536 = vadd.f32 %v392, %v535
  %537 = vdwg.mxu0
  %538 = vmatpush.msra.mxu0 0.0
  %539 = vmatpush.msra.mxu0 0.0
  %540 = vmatpush.msra.mxu0 0.0
  %541 = vmatpush.msra.mxu0 0.0
  %542 = vmatpush.msra.mxu0 0.0
  %543 = vmatpush.msra.mxu0 0.0
  %544 = vmatpush.msra.mxu0 0.0
  %545 = vmatpush.msra.mxu0 0.0
  %546 = vmatpush.msra.mxu0 0.0
  %547 = vmatpush.msra.mxu0 0.0
  %548 = vmatpush.msra.mxu0 0.0
  %549 = vmatpush.msra.mxu0 0.0
  %550 = vmatpush.msra.mxu0 0.0
  %551 = vmatpush.msra.mxu0 0.0
  %552 = vmatpush.msra.mxu0 0.0
  %553 = vmatpush.msra.mxu0 %v415
  %554 = vmatmul.f32.gmra.mxu0 %v396
  %v555 = vpop.f32.mrf.mxu0
  %v556 = vadd.f32 %v392, %v555
  %557 = vdwg.mxu0
  %558 = vmatpush.msra.mxu0 0.0
  %559 = vmatpush.msra.mxu0 0.0
  %560 = vmatpush.msra.mxu0 0.0
  %561 = vmatpush.msra.mxu0 0.0
  %562 = vmatpush.msra.mxu0 0.0
  %563 = vmatpush.msra.mxu0 0.0
  %564 = vmatpush.msra.mxu0 0.0
  %565 = vmatpush.msra.mxu0 0.0
  %566 = vmatpush.msra.mxu0 0.0
  %567 = vmatpush.msra.mxu0 0.0
  %568 = vmatpush.msra.mxu0 0.0
  %569 = vmatpush.msra.mxu0 0.0
  %570 = vmatpush.msra.mxu0 0.0
  %571 = vmatpush.msra.mxu0 0.0
  %572 = vmatpush.msra.mxu0 0.0
  %573 = vmatpush.msra.mxu0 %v418
  %574 = vmatmul.f32.gmra.mxu0 %v396
  %v575 = vpop.f32.mrf.mxu0
  %v576 = vadd.f32 %v392, %v575
  %577 = vdwg.mxu0
  %578 = vmatpush.msra.mxu0 0.0
  %579 = vmatpush.msra.mxu0 0.0
  %580 = vmatpush.msra.mxu0 0.0
  %581 = vmatpush.msra.mxu0 0.0
  %582 = vmatpush.msra.mxu0 0.0
  %583 = vmatpush.msra.mxu0 0.0
  %584 = vmatpush.msra.mxu0 0.0
  %585 = vmatpush.msra.mxu0 0.0
  %586 = vmatpush.msra.mxu0 0.0
  %587 = vmatpush.msra.mxu0 0.0
  %588 = vmatpush.msra.mxu0 0.0
  %589 = vmatpush.msra.mxu0 0.0
  %590 = vmatpush.msra.mxu0 0.0
  %591 = vmatpush.msra.mxu0 0.0
  %592 = vmatpush.msra.mxu0 0.0
  %593 = vmatpush.msra.mxu0 %v421
  %594 = vmatmul.f32.gmra.mxu0 %v396
  %v595 = vpop.f32.mrf.mxu0
  %v596 = vadd.f32 %v392, %v595
  %597 = vdwg.mxu0
  %598 = vmatpush.msra.mxu0 0.0
  %599 = vmatpush.msra.mxu0 0.0
  %600 = vmatpush.msra.mxu0 0.0
  %601 = vmatpush.msra.mxu0 0.0
  %602 = vmatpush.msra.mxu0 0.0
  %603 = vmatpush.msra.mxu0 0.0
  %604 = vmatpush.msra.mxu0 0.0
  %605 = vmatpush.msra.mxu0 0.0
  %606 = vmatpush.msra.mxu0 0.0
  %607 = vmatpush.msra.mxu0 0.0
  %608 = vmatpush.msra.mxu0 0.0
  %609 = vmatpush.msra.mxu0 0.0
  %610 = vmatpush.msra.mxu0 0.0
  %611 = vmatpush.msra.mxu0 0.0
  %612 = vmatpush.msra.mxu0 0.0
  %613 = vmatpush.msra.mxu0 %v424
  %614 = vmatmul.f32.gmra.mxu0 %v396
  %v615 = vpop.f32.mrf.mxu0
  %v616 = vadd.f32 %v392, %v615
  %617 = vdwg.mxu0
  %618 = vmatpush.msra.mxu0 0.0
  %619 = vmatpush.msra.mxu0 0.0
  %620 = vmatpush.msra.mxu0 0.0
  %621 = vmatpush.msra.mxu0 0.0
  %622 = vmatpush.msra.mxu0 0.0
  %623 = vmatpush.msra.mxu0 0.0
  %624 = vmatpush.msra.mxu0 0.0
  %625 = vmatpush.msra.mxu0 0.0
  %626 = vmatpush.msra.mxu0 0.0
  %627 = vmatpush.msra.mxu0 0.0
  %628 = vmatpush.msra.mxu0 0.0
  %629 = vmatpush.msra.mxu0 0.0
  %630 = vmatpush.msra.mxu0 0.0
  %631 = vmatpush.msra.mxu0 0.0
  %632 = vmatpush.msra.mxu0 0.0
  %633 = vmatpush.msra.mxu0 %v427
  %634 = vmatmul.f32.gmra.mxu0 %v396
  %v635 = vpop.f32.mrf.mxu0
  %v636 = vadd.f32 %v392, %v635
  %637 = vdwg.mxu0
  %638 = vmatpush.msra.mxu0 0.0
  %639 = vmatpush.msra.mxu0 0.0
  %640 = vmatpush.msra.mxu0 0.0
  %641 = vmatpush.msra.mxu0 0.0
  %642 = vmatpush.msra.mxu0 0.0
  %643 = vmatpush.msra.mxu0 0.0
  %644 = vmatpush.msra.mxu0 0.0
  %645 = vmatpush.msra.mxu0 0.0
  %646 = vmatpush.msra.mxu0 0.0
  %647 = vmatpush.msra.mxu0 0.0
  %648 = vmatpush.msra.mxu0 0.0
  %649 = vmatpush.msra.mxu0 0.0
  %650 = vmatpush.msra.mxu0 0.0
  %651 = vmatpush.msra.mxu0 0.0
  %652 = vmatpush.msra.mxu0 0.0
  %653 = vmatpush.msra.mxu0 %v430
  %654 = vmatmul.f32.gmra.mxu0 %v396
  %v655 = vpop.f32.mrf.mxu0
  %v656 = vadd.f32 %v392, %v655
  %657 = vdwg.mxu0
  %658 = vmatpush.msra.mxu0 0.0
  %659 = vmatpush.msra.mxu0 0.0
  %660 = vmatpush.msra.mxu0 0.0
  %661 = vmatpush.msra.mxu0 0.0
  %662 = vmatpush.msra.mxu0 0.0
  %663 = vmatpush.msra.mxu0 0.0
  %664 = vmatpush.msra.mxu0 0.0
  %665 = vmatpush.msra.mxu0 0.0
  %666 = vmatpush.msra.mxu0 0.0
  %667 = vmatpush.msra.mxu0 0.0
  %668 = vmatpush.msra.mxu0 0.0
  %669 = vmatpush.msra.mxu0 0.0
  %670 = vmatpush.msra.mxu0 0.0
  %671 = vmatpush.msra.mxu0 0.0
  %672 = vmatpush.msra.mxu0 0.0
  %673 = vmatpush.msra.mxu0 %v433
  %674 = vmatmul.f32.gmra.mxu0 %v396
  %v675 = vpop.f32.mrf.mxu0
  %v676 = vadd.f32 %v392, %v675
  %677 = vdwg.mxu0
  %678 = vmatpush.msra.mxu0 0.0
  %679 = vmatpush.msra.mxu0 0.0
  %680 = vmatpush.msra.mxu0 0.0
  %681 = vmatpush.msra.mxu0 0.0
  %682 = vmatpush.msra.mxu0 0.0
  %683 = vmatpush.msra.mxu0 0.0
  %684 = vmatpush.msra.mxu0 0.0
  %685 = vmatpush.msra.mxu0 0.0
  %686 = vmatpush.msra.mxu0 0.0
  %687 = vmatpush.msra.mxu0 0.0
  %688 = vmatpush.msra.mxu0 0.0
  %689 = vmatpush.msra.mxu0 0.0
  %690 = vmatpush.msra.mxu0 0.0
  %691 = vmatpush.msra.mxu0 0.0
  %692 = vmatpush.msra.mxu0 0.0
  %693 = vmatpush.msra.mxu0 %v436
  %694 = vmatmul.f32.gmra.mxu0 %v396
  %v695 = vpop.f32.mrf.mxu0
  %v696 = vadd.f32 %v392, %v695
  %697 = vdwg.mxu0
  %v698 = vmax.f32 %v456, 0.0
  %v699 = vmax.f32 %v476, 0.0
  %v700 = vmax.f32 %v496, 0.0
  %v701 = vmax.f32 %v516, 0.0
  %v702 = vmax.f32 %v536, 0.0
  %v703 = vmax.f32 %v556, 0.0
  %v704 = vmax.f32 %v576, 0.0
  %v705 = vmax.f32 %v596, 0.0
  %v706 = vmax.f32 %v616, 0.0
  %v707 = vmax.f32 %v636, 0.0
  %v708 = vmax.f32 %v656, 0.0
  %v709 = vmax.f32 %v676, 0.0
  %v710 = vmax.f32 %v696, 0.0
  %711 = vst [vmem:[%s4] sm:$0x3f] %v698
  %712 = vst [vmem:[%s4 + $0x8] sm:$0x3f] %v699
  %713 = vst [vmem:[%s4 + $0x10] sm:$0x3f] %v700
  %714 = vst [vmem:[%s4 + $0x18] sm:$0x3f] %v701
  %715 = vst [vmem:[%s4 + $0x20] sm:$0x3f] %v702
  %716 = vst [vmem:[%s4 + $0x28] sm:$0x3f] %v703
  %717 = vst [vmem:[%s4 + $0x30] sm:$0x3f] %v704
  %718 = vst [vmem:[%s4 + $0x38] sm:$0x3f] %v705
  %719 = vst [vmem:[%s4 + $0x40] sm:$0x3f] %v706
  %720 = vst [vmem:[%s4 + $0x48] sm:$0x3f] %v707
  %721 = vst [vmem:[%s4 + $0x50] sm:$0x3f] %v708
  %722 = vst [vmem:[%s4 + $0x58] sm:$0x3f] %v709
  %vm723 = vcmask 259072
  %724 = vst.msk [vmem:[%s4 + $0x60] sm:$0x3f] %vm723, %v710
  // Predicated region
  $region18: #{netdec_forward.3} parent=0 // pred_check
    _
  $region19: #{netdec_forward.3} parent=0 // pred_check_branch
    %726 = sbr.rel (0) target = $region21
  $region20: #{netdec_forward.3} parent=0 // pred_region
    _
  $region21: #{netdec_forward.3} parent=0 // pred_fallthru
    _
  // Predicated region
  $region22: #{netdec_forward.3} parent=0 // pred_check
    _
  $region23: #{netdec_forward.3} parent=0 // pred_check_branch
    %728 = sbr.rel (0) target = $region25
  $region24: #{netdec_forward.3} parent=0 // pred_region
    _
  $region25: #{netdec_forward.3} parent=0 // pred_fallthru
    _

// kernel: netdec_forward.4
$region0: #{netdec_forward.4}
  #allocation0 [shape = 'u32[]', space=smem, size = 0x4, offset = 0x4, fixed_abs, tag = 'smem constant byte address 0x4 - core index']
  #allocation1 [shape = 'u32[72,128]{1,0:T(1,128)}', space=vmem, size = 0x9000, scoped, tag = 'internal scratch']
  %s0 = inlined_call_operand.vmem [shape: f32[150,200], index: 0, kind: input, shape index: {}]
  %s1 = inlined_call_operand.vmem [shape: f32[200,150], index: 1, kind: input, shape index: {}]
  %s2 = inlined_call_operand.vmem [shape: f32[8,200], index: 2, kind: input, shape index: {}]
  %s3 = inlined_call_operand.vmem [shape: f32[16,8], index: 3, kind: input, shape index: {}]
  %s4 = inlined_call_operand.vmem [shape: f32[16,1], index: 4, kind: input, shape index: {}]
  %s5 = inlined_call_operand.vmem [shape: f32[16,200], index: 5, kind: output, shape index: {}]
  %s6 = sld [smem:[#allocation0]]
  $region30: #{netdec_forward.4} parent=0
    _
  %s8 = ssub.s32 1, %s6
  %s9 = scalar_select 0, %s8, %s6
  // Predicated region
  $region2: #{netdec_forward.4} parent=0 // pred_check
    _
  $region3: #{netdec_forward.4} parent=0 // pred_check_branch
    %11 = sbr.rel (0) target = $region5
  $region4: #{netdec_forward.4} parent=0 // pred_region
    _
  $region5: #{netdec_forward.4} parent=0 // pred_fallthru
    _
  // Predicated region
  $region6: #{netdec_forward.4} parent=0 // pred_check
    _
  $region7: #{netdec_forward.4} parent=0 // pred_check_branch
    %13 = sbr.rel (0) target = $region9
  $region8: #{netdec_forward.4} parent=0 // pred_region
    _
  $region9: #{netdec_forward.4} parent=0 // pred_fallthru
    _
  // Predicated region
  $region10: #{netdec_forward.4} parent=0 // pred_check
    _
  $region11: #{netdec_forward.4} parent=0 // pred_check_branch
    %15 = sbr.rel (0) target = $region13
  $region12: #{netdec_forward.4} parent=0 // pred_region
    _
  $region13: #{netdec_forward.4} parent=0 // pred_fallthru
    _
  // Predicated region
  $region14: #{netdec_forward.4} parent=0 // pred_check
    _
  $region15: #{netdec_forward.4} parent=0 // pred_check_branch
    %17 = sbr.rel (0) target = $region17
  $region16: #{netdec_forward.4} parent=0 // pred_region
    _
  $region17: #{netdec_forward.4} parent=0 // pred_fallthru
    _
  // Predicated region
  $region18: #{netdec_forward.4} parent=0 // pred_check
    _
  $region19: #{netdec_forward.4} parent=0 // pred_check_branch
    %19 = sbr.rel (0) target = $region21
  $region20: #{netdec_forward.4} parent=0 // pred_region
    _
  $region21: #{netdec_forward.4} parent=0 // pred_fallthru
    _
  %v20 = vld [vmem:[%s1] sm:$0xff]
  %v21 = vld [vmem:[%s1 + $0x8] sm:$0xff]
  %v22 = vld [vmem:[%s1 + $0x10] sm:$0xff]
  %v23 = vld [vmem:[%s1 + $0x18] sm:$0xff]
  %v24 = vld [vmem:[%s1 + $0x20] sm:$0xff]
  %v25 = vld [vmem:[%s1 + $0x28] sm:$0xff]
  %v26 = vld [vmem:[%s1 + $0x30] sm:$0xff]
  %v27 = vld [vmem:[%s1 + $0x38] sm:$0xff]
  %v28 = vld [vmem:[%s1 + $0x40] sm:$0xff]
  %v29 = vld [vmem:[%s1 + $0x48] sm:$0xff]
  %v30 = vld [vmem:[%s1 + $0x50] sm:$0xff]
  %v31 = vld [vmem:[%s1 + $0x58] sm:$0xff]
  %v32 = vld [vmem:[%s1 + $0x60] sm:$0xff]
  %v33 = vld [vmem:[%s1 + $0x68] sm:$0xff]
  %v34 = vld [vmem:[%s1 + $0x70] sm:$0xff]
  %v35 = vld [vmem:[%s1 + $0x78] sm:$0xff]
  %v36 = vld [vmem:[%s1 + $0x80] sm:$0xff]
  %v37 = vld [vmem:[%s1 + $0x88] sm:$0xff]
  %v38 = vld [vmem:[%s1 + $0x90] sm:$0xff]
  %v39 = vld [vmem:[%s1 + $0x98] sm:$0xff]
  %v40 = vld [vmem:[%s1 + $0xa0] sm:$0xff]
  %v41 = vld [vmem:[%s1 + $0xa8] sm:$0xff]
  %v42 = vld [vmem:[%s1 + $0xb0] sm:$0xff]
  %v43 = vld [vmem:[%s1 + $0xb8] sm:$0xff]
  %v44 = vld [vmem:[%s1 + $0xc0] sm:$0xff]
  %v45 = vld [vmem:[%s1 + $0xc8] sm:$0xff]
  %v46 = vld [vmem:[%s1 + $0xd0] sm:$0xff]
  %v47 = vld [vmem:[%s1 + $0xd8] sm:$0xff]
  %v48 = vld [vmem:[%s1 + $0xe0] sm:$0xff]
  %v49 = vld [vmem:[%s1 + $0xe8] sm:$0xff]
  %v50 = vld [vmem:[%s1 + $0xf0] sm:$0xff]
  %v51 = vld [vmem:[%s1 + $0xf8] sm:$0xff]
  %v52 = vld [vmem:[%s1 + $0x100] sm:$0xff]
  %v53 = vld [vmem:[%s1 + $0x108] sm:$0xff]
  %v54 = vld [vmem:[%s1 + $0x110] sm:$0xff]
  %v55 = vld [vmem:[%s1 + $0x118] sm:$0xff]
  %v56 = vld [vmem:[%s1 + $0x120] sm:$0xff]
  %v57 = vld [vmem:[%s1 + $0x128] sm:$0xff]
  %v58 = vld [vmem:[%s1 + $0x130] sm:$0xff]
  %v59 = vld [vmem:[%s1 + $0x138] sm:$0xff]
  %v60 = vld [vmem:[%s1 + $0x140] sm:$0xff]
  %v61 = vld [vmem:[%s1 + $0x148] sm:$0xff]
  %v62 = vld [vmem:[%s1 + $0x150] sm:$0xff]
  %v63 = vld [vmem:[%s1 + $0x158] sm:$0xff]
  %v64 = vld [vmem:[%s1 + $0x160] sm:$0xff]
  %v65 = vld [vmem:[%s1 + $0x168] sm:$0xff]
  %v66 = vld [vmem:[%s1 + $0x170] sm:$0xff]
  %v67 = vld [vmem:[%s1 + $0x178] sm:$0xff]
  %v68 = vld [vmem:[%s1 + $0x180] sm:$0xff]
  %v69 = vld [vmem:[%s1 + $0x188] sm:$0xff]
  %v70 = vld [vmem:[%s0] sm:$0xff]
  %v71 = vld [vmem:[%s0 + $0x8] sm:$0xff]
  %v72 = vld [vmem:[%s0 + $0x10] sm:$0xff]
  %v73 = vld [vmem:[%s0 + $0x18] sm:$0xff]
  %v74 = vld [vmem:[%s0 + $0x20] sm:$0xff]
  %v75 = vld [vmem:[%s0 + $0x28] sm:$0xff]
  %v76 = vld [vmem:[%s0 + $0x30] sm:$0xff]
  %v77 = vld [vmem:[%s0 + $0x38] sm:$0xff]
  %v78 = vld [vmem:[%s0 + $0x40] sm:$0xff]
  %v79 = vld [vmem:[%s0 + $0x48] sm:$0xff]
  %v80 = vld [vmem:[%s0 + $0x50] sm:$0xff]
  %v81 = vld [vmem:[%s0 + $0x58] sm:$0xff]
  %v82 = vld [vmem:[%s0 + $0x60] sm:$0xff]
  %v83 = vld [vmem:[%s0 + $0x68] sm:$0xff]
  %v84 = vld [vmem:[%s0 + $0x70] sm:$0xff]
  %v85 = vld [vmem:[%s0 + $0x78] sm:$0xff]
  %v86 = vld [vmem:[%s0 + $0x80] sm:$0xff]
  %v87 = vld [vmem:[%s0 + $0x88] sm:$0xff]
  %v88 = vld [vmem:[%s0 + $0x90] sm:$0xff]
  %v89 = vld [vmem:[%s0 + $0x98] sm:$0xff]
  %v90 = vld [vmem:[%s0 + $0xa0] sm:$0xff]
  %v91 = vld [vmem:[%s0 + $0xa8] sm:$0xff]
  %v92 = vld [vmem:[%s0 + $0xb0] sm:$0xff]
  %v93 = vld [vmem:[%s0 + $0xb8] sm:$0xff]
  %v94 = vld [vmem:[%s0 + $0xc0] sm:$0xff]
  %v95 = vld [vmem:[%s0 + $0xc8] sm:$0xff]
  %v96 = vld [vmem:[%s0 + $0xd0] sm:$0xff]
  %v97 = vld [vmem:[%s0 + $0xd8] sm:$0xff]
  %v98 = vld [vmem:[%s0 + $0xe0] sm:$0xff]
  %v99 = vld [vmem:[%s0 + $0xe8] sm:$0xff]
  %v100 = vld [vmem:[%s0 + $0xf0] sm:$0xff]
  %v101 = vld [vmem:[%s0 + $0xf8] sm:$0xff]
  %v102 = vld [vmem:[%s0 + $0x100] sm:$0xff]
  %v103 = vld [vmem:[%s0 + $0x108] sm:$0xff]
  %v104 = vld [vmem:[%s0 + $0x110] sm:$0xff]
  %v105 = vld [vmem:[%s0 + $0x118] sm:$0xff]
  %v106 = vld [vmem:[%s0 + $0x120] sm:$0x3f]
  %v107 = vld [vmem:[%s0 + $0x128] sm:$0x3f]
  %vm108 = vcmask 179200
  %v110 = vsel %vm108, %v21, 0
  %v113 = vsel %vm108, %v23, 0
  %v116 = vsel %vm108, %v25, 0
  %v119 = vsel %vm108, %v27, 0
  %v122 = vsel %vm108, %v29, 0
  %v125 = vsel %vm108, %v31, 0
  %v128 = vsel %vm108, %v33, 0
  %v131 = vsel %vm108, %v35, 0
  %v134 = vsel %vm108, %v37, 0
  %v137 = vsel %vm108, %v39, 0
  %v140 = vsel %vm108, %v41, 0
  %v143 = vsel %vm108, %v43, 0
  %v146 = vsel %vm108, %v45, 0
  %v149 = vsel %vm108, %v47, 0
  %v152 = vsel %vm108, %v49, 0
  %v155 = vsel %vm108, %v51, 0
  %v158 = vsel %vm108, %v53, 0
  %v161 = vsel %vm108, %v55, 0
  %v164 = vsel %vm108, %v57, 0
  %v167 = vsel %vm108, %v59, 0
  %v170 = vsel %vm108, %v61, 0
  %v173 = vsel %vm108, %v63, 0
  %v176 = vsel %vm108, %v65, 0
  %v179 = vsel %vm108, %v67, 0
  %v182 = vsel %vm108, %v69, 0
  %vm184 = vcmask 1045504
  %v186 = vsel %vm184, %v106, 0
  %v189 = vsel %vm184, %v107, 0
  %191 = vmatpush.msra.mxu0 %v100
  %192 = vmatpush.msra.mxu0 %v98
  %193 = vmatpush.msra.mxu0 %v96
  %194 = vmatpush.msra.mxu0 %v94
  %195 = vmatpush.msra.mxu0 %v92
  %196 = vmatpush.msra.mxu0 %v90
  %197 = vmatpush.msra.mxu0 %v88
  %198 = vmatpush.msra.mxu0 %v86
  %199 = vmatpush.msra.mxu0 %v84
  %200 = vmatpush.msra.mxu0 %v82
  %201 = vmatpush.msra.mxu0 %v80
  %202 = vmatpush.msra.mxu0 %v78
  %203 = vmatpush.msra.mxu0 %v76
  %204 = vmatpush.msra.mxu0 %v74
  %205 = vmatpush.msra.mxu0 %v72
  %206 = vmatpush.msra.mxu0 %v70
  %207 = vmatmul.f32.gmra.mxu0 %v20
  %v208 = vpop.f32.mrf.mxu0
  %v209 = vadd.f32 0.0, %v208
  %210 = vmatmul.f32.gmra.mxu0 %v22
  %v211 = vpop.f32.mrf.mxu0
  %v212 = vadd.f32 0.0, %v211
  %213 = vmatmul.f32.gmra.mxu0 %v24
  %v214 = vpop.f32.mrf.mxu0
  %v215 = vadd.f32 0.0, %v214
  %216 = vmatmul.f32.gmra.mxu0 %v26
  %v217 = vpop.f32.mrf.mxu0
  %v218 = vadd.f32 0.0, %v217
  %219 = vmatmul.f32.gmra.mxu0 %v28
  %v220 = vpop.f32.mrf.mxu0
  %v221 = vadd.f32 0.0, %v220
  %222 = vmatmul.f32.gmra.mxu0 %v30
  %v223 = vpop.f32.mrf.mxu0
  %v224 = vadd.f32 0.0, %v223
  %225 = vmatmul.f32.gmra.mxu0 %v32
  %v226 = vpop.f32.mrf.mxu0
  %v227 = vadd.f32 0.0, %v226
  %228 = vmatmul.f32.gmra.mxu0 %v34
  %v229 = vpop.f32.mrf.mxu0
  %v230 = vadd.f32 0.0, %v229
  %231 = vmatmul.f32.gmra.mxu0 %v36
  %v232 = vpop.f32.mrf.mxu0
  %v233 = vadd.f32 0.0, %v232
  %234 = vmatmul.f32.gmra.mxu0 %v38
  %v235 = vpop.f32.mrf.mxu0
  %v236 = vadd.f32 0.0, %v235
  %237 = vmatmul.f32.gmra.mxu0 %v40
  %v238 = vpop.f32.mrf.mxu0
  %v239 = vadd.f32 0.0, %v238
  %240 = vmatmul.f32.gmra.mxu0 %v42
  %v241 = vpop.f32.mrf.mxu0
  %v242 = vadd.f32 0.0, %v241
  %243 = vmatmul.f32.gmra.mxu0 %v44
  %v244 = vpop.f32.mrf.mxu0
  %v245 = vadd.f32 0.0, %v244
  %246 = vmatmul.f32.gmra.mxu0 %v46
  %v247 = vpop.f32.mrf.mxu0
  %v248 = vadd.f32 0.0, %v247
  %249 = vmatmul.f32.gmra.mxu0 %v48
  %v250 = vpop.f32.mrf.mxu0
  %v251 = vadd.f32 0.0, %v250
  %252 = vmatmul.f32.gmra.mxu0 %v50
  %v253 = vpop.f32.mrf.mxu0
  %v254 = vadd.f32 0.0, %v253
  %255 = vmatmul.f32.gmra.mxu0 %v52
  %v256 = vpop.f32.mrf.mxu0
  %v257 = vadd.f32 0.0, %v256
  %258 = vmatmul.f32.gmra.mxu0 %v54
  %v259 = vpop.f32.mrf.mxu0
  %v260 = vadd.f32 0.0, %v259
  %261 = vmatmul.f32.gmra.mxu0 %v56
  %v262 = vpop.f32.mrf.mxu0
  %v263 = vadd.f32 0.0, %v262
  %264 = vmatmul.f32.gmra.mxu0 %v58
  %v265 = vpop.f32.mrf.mxu0
  %v266 = vadd.f32 0.0, %v265
  %267 = vmatmul.f32.gmra.mxu0 %v60
  %v268 = vpop.f32.mrf.mxu0
  %v269 = vadd.f32 0.0, %v268
  %270 = vmatmul.f32.gmra.mxu0 %v62
  %v271 = vpop.f32.mrf.mxu0
  %v272 = vadd.f32 0.0, %v271
  %273 = vmatmul.f32.gmra.mxu0 %v64
  %v274 = vpop.f32.mrf.mxu0
  %v275 = vadd.f32 0.0, %v274
  %276 = vmatmul.f32.gmra.mxu0 %v66
  %v277 = vpop.f32.mrf.mxu0
  %v278 = vadd.f32 0.0, %v277
  %279 = vmatmul.f32.gmra.mxu0 %v68
  %v280 = vpop.f32.mrf.mxu0
  %v281 = vadd.f32 0.0, %v280
  %282 = vdwg.mxu0
  %283 = vmatpush.msra.mxu0 0.0
  %284 = vmatpush.msra.mxu0 0.0
  %285 = vmatpush.msra.mxu0 0.0
  %286 = vmatpush.msra.mxu0 0.0
  %287 = vmatpush.msra.mxu0 0.0
  %288 = vmatpush.msra.mxu0 0.0
  %289 = vmatpush.msra.mxu0 0.0
  %290 = vmatpush.msra.mxu0 0.0
  %291 = vmatpush.msra.mxu0 0.0
  %292 = vmatpush.msra.mxu0 0.0
  %293 = vmatpush.msra.mxu0 0.0
  %294 = vmatpush.msra.mxu0 0.0
  %295 = vmatpush.msra.mxu0 0.0
  %296 = vmatpush.msra.mxu0 %v186
  %297 = vmatpush.msra.mxu0 %v104
  %298 = vmatpush.msra.mxu0 %v102
  %299 = vmatmul.f32.gmra.mxu0 %v110
  %v300 = vpop.f32.mrf.mxu0
  %v301 = vadd.f32 %v209, %v300
  %302 = vmatmul.f32.gmra.mxu0 %v113
  %v303 = vpop.f32.mrf.mxu0
  %v304 = vadd.f32 %v212, %v303
  %305 = vmatmul.f32.gmra.mxu0 %v116
  %v306 = vpop.f32.mrf.mxu0
  %v307 = vadd.f32 %v215, %v306
  %308 = vmatmul.f32.gmra.mxu0 %v119
  %v309 = vpop.f32.mrf.mxu0
  %v310 = vadd.f32 %v218, %v309
  %311 = vmatmul.f32.gmra.mxu0 %v122
  %v312 = vpop.f32.mrf.mxu0
  %v313 = vadd.f32 %v221, %v312
  %314 = vmatmul.f32.gmra.mxu0 %v125
  %v315 = vpop.f32.mrf.mxu0
  %v316 = vadd.f32 %v224, %v315
  %317 = vmatmul.f32.gmra.mxu0 %v128
  %v318 = vpop.f32.mrf.mxu0
  %v319 = vadd.f32 %v227, %v318
  %320 = vmatmul.f32.gmra.mxu0 %v131
  %v321 = vpop.f32.mrf.mxu0
  %v322 = vadd.f32 %v230, %v321
  %323 = vmatmul.f32.gmra.mxu0 %v134
  %v324 = vpop.f32.mrf.mxu0
  %v325 = vadd.f32 %v233, %v324
  %326 = vmatmul.f32.gmra.mxu0 %v137
  %v327 = vpop.f32.mrf.mxu0
  %v328 = vadd.f32 %v236, %v327
  %329 = vmatmul.f32.gmra.mxu0 %v140
  %v330 = vpop.f32.mrf.mxu0
  %v331 = vadd.f32 %v239, %v330
  %332 = vmatmul.f32.gmra.mxu0 %v143
  %v333 = vpop.f32.mrf.mxu0
  %v334 = vadd.f32 %v242, %v333
  %335 = vmatmul.f32.gmra.mxu0 %v146
  %v336 = vpop.f32.mrf.mxu0
  %v337 = vadd.f32 %v245, %v336
  %338 = vmatmul.f32.gmra.mxu0 %v149
  %v339 = vpop.f32.mrf.mxu0
  %v340 = vadd.f32 %v248, %v339
  %341 = vmatmul.f32.gmra.mxu0 %v152
  %v342 = vpop.f32.mrf.mxu0
  %v343 = vadd.f32 %v251, %v342
  %344 = vmatmul.f32.gmra.mxu0 %v155
  %v345 = vpop.f32.mrf.mxu0
  %v346 = vadd.f32 %v254, %v345
  %347 = vmatmul.f32.gmra.mxu0 %v158
  %v348 = vpop.f32.mrf.mxu0
  %v349 = vadd.f32 %v257, %v348
  %350 = vmatmul.f32.gmra.mxu0 %v161
  %v351 = vpop.f32.mrf.mxu0
  %v352 = vadd.f32 %v260, %v351
  %353 = vmatmul.f32.gmra.mxu0 %v164
  %v354 = vpop.f32.mrf.mxu0
  %v355 = vadd.f32 %v263, %v354
  %356 = vmatmul.f32.gmra.mxu0 %v167
  %v357 = vpop.f32.mrf.mxu0
  %v358 = vadd.f32 %v266, %v357
  %359 = vmatmul.f32.gmra.mxu0 %v170
  %v360 = vpop.f32.mrf.mxu0
  %v361 = vadd.f32 %v269, %v360
  %362 = vmatmul.f32.gmra.mxu0 %v173
  %v363 = vpop.f32.mrf.mxu0
  %v364 = vadd.f32 %v272, %v363
  %365 = vmatmul.f32.gmra.mxu0 %v176
  %v366 = vpop.f32.mrf.mxu0
  %v367 = vadd.f32 %v275, %v366
  %368 = vmatmul.f32.gmra.mxu0 %v179
  %v369 = vpop.f32.mrf.mxu0
  %v370 = vadd.f32 %v278, %v369
  %371 = vmatmul.f32.gmra.mxu0 %v182
  %v372 = vpop.f32.mrf.mxu0
  %v373 = vadd.f32 %v281, %v372
  %374 = vdwg.mxu0
  %375 = vmatpush.msra.mxu0 %v101
  %376 = vmatpush.msra.mxu0 %v99
  %377 = vmatpush.msra.mxu0 %v97
  %378 = vmatpush.msra.mxu0 %v95
  %379 = vmatpush.msra.mxu0 %v93
  %380 = vmatpush.msra.mxu0 %v91
  %381 = vmatpush.msra.mxu0 %v89
  %382 = vmatpush.msra.mxu0 %v87
  %383 = vmatpush.msra.mxu0 %v85
  %384 = vmatpush.msra.mxu0 %v83
  %385 = vmatpush.msra.mxu0 %v81
  %386 = vmatpush.msra.mxu0 %v79
  %387 = vmatpush.msra.mxu0 %v77
  %388 = vmatpush.msra.mxu0 %v75
  %389 = vmatpush.msra.mxu0 %v73
  %390 = vmatpush.msra.mxu0 %v71
  %391 = vmatmul.f32.gmra.mxu0 %v20
  %v392 = vpop.f32.mrf.mxu0
  %v393 = vadd.f32 0.0, %v392
  %394 = vmatmul.f32.gmra.mxu0 %v22
  %v395 = vpop.f32.mrf.mxu0
  %v396 = vadd.f32 0.0, %v395
  %397 = vmatmul.f32.gmra.mxu0 %v24
  %v398 = vpop.f32.mrf.mxu0
  %v399 = vadd.f32 0.0, %v398
  %400 = vmatmul.f32.gmra.mxu0 %v26
  %v401 = vpop.f32.mrf.mxu0
  %v402 = vadd.f32 0.0, %v401
  %403 = vmatmul.f32.gmra.mxu0 %v28
  %v404 = vpop.f32.mrf.mxu0
  %v405 = vadd.f32 0.0, %v404
  %406 = vmatmul.f32.gmra.mxu0 %v30
  %v407 = vpop.f32.mrf.mxu0
  %v408 = vadd.f32 0.0, %v407
  %409 = vmatmul.f32.gmra.mxu0 %v32
  %v410 = vpop.f32.mrf.mxu0
  %v411 = vadd.f32 0.0, %v410
  %412 = vmatmul.f32.gmra.mxu0 %v34
  %v413 = vpop.f32.mrf.mxu0
  %v414 = vadd.f32 0.0, %v413
  %415 = vmatmul.f32.gmra.mxu0 %v36
  %v416 = vpop.f32.mrf.mxu0
  %v417 = vadd.f32 0.0, %v416
  %418 = vmatmul.f32.gmra.mxu0 %v38
  %v419 = vpop.f32.mrf.mxu0
  %v420 = vadd.f32 0.0, %v419
  %421 = vmatmul.f32.gmra.mxu0 %v40
  %v422 = vpop.f32.mrf.mxu0
  %v423 = vadd.f32 0.0, %v422
  %424 = vmatmul.f32.gmra.mxu0 %v42
  %v425 = vpop.f32.mrf.mxu0
  %v426 = vadd.f32 0.0, %v425
  %427 = vmatmul.f32.gmra.mxu0 %v44
  %v428 = vpop.f32.mrf.mxu0
  %v429 = vadd.f32 0.0, %v428
  %430 = vmatmul.f32.gmra.mxu0 %v46
  %v431 = vpop.f32.mrf.mxu0
  %v432 = vadd.f32 0.0, %v431
  %433 = vmatmul.f32.gmra.mxu0 %v48
  %v434 = vpop.f32.mrf.mxu0
  %v435 = vadd.f32 0.0, %v434
  %436 = vmatmul.f32.gmra.mxu0 %v50
  %v437 = vpop.f32.mrf.mxu0
  %v438 = vadd.f32 0.0, %v437
  %439 = vmatmul.f32.gmra.mxu0 %v52
  %v440 = vpop.f32.mrf.mxu0
  %v441 = vadd.f32 0.0, %v440
  %442 = vmatmul.f32.gmra.mxu0 %v54
  %v443 = vpop.f32.mrf.mxu0
  %v444 = vadd.f32 0.0, %v443
  %445 = vmatmul.f32.gmra.mxu0 %v56
  %v446 = vpop.f32.mrf.mxu0
  %v447 = vadd.f32 0.0, %v446
  %448 = vmatmul.f32.gmra.mxu0 %v58
  %v449 = vpop.f32.mrf.mxu0
  %v450 = vadd.f32 0.0, %v449
  %451 = vmatmul.f32.gmra.mxu0 %v60
  %v452 = vpop.f32.mrf.mxu0
  %v453 = vadd.f32 0.0, %v452
  %454 = vmatmul.f32.gmra.mxu0 %v62
  %v455 = vpop.f32.mrf.mxu0
  %v456 = vadd.f32 0.0, %v455
  %457 = vmatmul.f32.gmra.mxu0 %v64
  %v458 = vpop.f32.mrf.mxu0
  %v459 = vadd.f32 0.0, %v458
  %460 = vmatmul.f32.gmra.mxu0 %v66
  %v461 = vpop.f32.mrf.mxu0
  %v462 = vadd.f32 0.0, %v461
  %463 = vmatmul.f32.gmra.mxu0 %v68
  %v464 = vpop.f32.mrf.mxu0
  %v465 = vadd.f32 0.0, %v464
  %466 = vdwg.mxu0
  %467 = vmatpush.msra.mxu0 0.0
  %468 = vmatpush.msra.mxu0 0.0
  %469 = vmatpush.msra.mxu0 0.0
  %470 = vmatpush.msra.mxu0 0.0
  %471 = vmatpush.msra.mxu0 0.0
  %472 = vmatpush.msra.mxu0 0.0
  %473 = vmatpush.msra.mxu0 0.0
  %474 = vmatpush.msra.mxu0 0.0
  %475 = vmatpush.msra.mxu0 0.0
  %476 = vmatpush.msra.mxu0 0.0
  %477 = vmatpush.msra.mxu0 0.0
  %478 = vmatpush.msra.mxu0 0.0
  %479 = vmatpush.msra.mxu0 0.0
  %480 = vmatpush.msra.mxu0 %v189
  %481 = vmatpush.msra.mxu0 %v105
  %482 = vmatpush.msra.mxu0 %v103
  %483 = vmatmul.f32.gmra.mxu0 %v110
  %v484 = vpop.f32.mrf.mxu0
  %v485 = vadd.f32 %v393, %v484
  %486 = vmatmul.f32.gmra.mxu0 %v113
  %v487 = vpop.f32.mrf.mxu0
  %v488 = vadd.f32 %v396, %v487
  %489 = vmatmul.f32.gmra.mxu0 %v116
  %v490 = vpop.f32.mrf.mxu0
  %v491 = vadd.f32 %v399, %v490
  %492 = vmatmul.f32.gmra.mxu0 %v119
  %v493 = vpop.f32.mrf.mxu0
  %v494 = vadd.f32 %v402, %v493
  %495 = vmatmul.f32.gmra.mxu0 %v122
  %v496 = vpop.f32.mrf.mxu0
  %v497 = vadd.f32 %v405, %v496
  %498 = vmatmul.f32.gmra.mxu0 %v125
  %v499 = vpop.f32.mrf.mxu0
  %v500 = vadd.f32 %v408, %v499
  %501 = vmatmul.f32.gmra.mxu0 %v128
  %v502 = vpop.f32.mrf.mxu0
  %v503 = vadd.f32 %v411, %v502
  %504 = vmatmul.f32.gmra.mxu0 %v131
  %v505 = vpop.f32.mrf.mxu0
  %v506 = vadd.f32 %v414, %v505
  %507 = vmatmul.f32.gmra.mxu0 %v134
  %v508 = vpop.f32.mrf.mxu0
  %v509 = vadd.f32 %v417, %v508
  %510 = vmatmul.f32.gmra.mxu0 %v137
  %v511 = vpop.f32.mrf.mxu0
  %v512 = vadd.f32 %v420, %v511
  %513 = vmatmul.f32.gmra.mxu0 %v140
  %v514 = vpop.f32.mrf.mxu0
  %v515 = vadd.f32 %v423, %v514
  %516 = vmatmul.f32.gmra.mxu0 %v143
  %v517 = vpop.f32.mrf.mxu0
  %v518 = vadd.f32 %v426, %v517
  %519 = vmatmul.f32.gmra.mxu0 %v146
  %v520 = vpop.f32.mrf.mxu0
  %v521 = vadd.f32 %v429, %v520
  %522 = vmatmul.f32.gmra.mxu0 %v149
  %v523 = vpop.f32.mrf.mxu0
  %v524 = vadd.f32 %v432, %v523
  %525 = vmatmul.f32.gmra.mxu0 %v152
  %v526 = vpop.f32.mrf.mxu0
  %v527 = vadd.f32 %v435, %v526
  %528 = vmatmul.f32.gmra.mxu0 %v155
  %v529 = vpop.f32.mrf.mxu0
  %v530 = vadd.f32 %v438, %v529
  %531 = vmatmul.f32.gmra.mxu0 %v158
  %v532 = vpop.f32.mrf.mxu0
  %v533 = vadd.f32 %v441, %v532
  %534 = vmatmul.f32.gmra.mxu0 %v161
  %v535 = vpop.f32.mrf.mxu0
  %v536 = vadd.f32 %v444, %v535
  %537 = vmatmul.f32.gmra.mxu0 %v164
  %v538 = vpop.f32.mrf.mxu0
  %v539 = vadd.f32 %v447, %v538
  %540 = vmatmul.f32.gmra.mxu0 %v167
  %v541 = vpop.f32.mrf.mxu0
  %v542 = vadd.f32 %v450, %v541
  %543 = vmatmul.f32.gmra.mxu0 %v170
  %v544 = vpop.f32.mrf.mxu0
  %v545 = vadd.f32 %v453, %v544
  %546 = vmatmul.f32.gmra.mxu0 %v173
  %v547 = vpop.f32.mrf.mxu0
  %v548 = vadd.f32 %v456, %v547
  %549 = vmatmul.f32.gmra.mxu0 %v176
  %v550 = vpop.f32.mrf.mxu0
  %v551 = vadd.f32 %v459, %v550
  %552 = vmatmul.f32.gmra.mxu0 %v179
  %v553 = vpop.f32.mrf.mxu0
  %v554 = vadd.f32 %v462, %v553
  %555 = vmatmul.f32.gmra.mxu0 %v182
  %v556 = vpop.f32.mrf.mxu0
  %v557 = vadd.f32 %v465, %v556
  %558 = vdwg.mxu0
  %v559 = vmax.f32 %v301, 0.0
  %v560 = vmax.f32 %v485, 0.0
  %v561 = vmax.f32 %v304, 0.0
  %v562 = vmax.f32 %v488, 0.0
  %v563 = vmax.f32 %v307, 0.0
  %v564 = vmax.f32 %v491, 0.0
  %v565 = vmax.f32 %v310, 0.0
  %v566 = vmax.f32 %v494, 0.0
  %v567 = vmax.f32 %v313, 0.0
  %v568 = vmax.f32 %v497, 0.0
  %v569 = vmax.f32 %v316, 0.0
  %v570 = vmax.f32 %v500, 0.0
  %v571 = vmax.f32 %v319, 0.0
  %v572 = vmax.f32 %v503, 0.0
  %v573 = vmax.f32 %v322, 0.0
  %v574 = vmax.f32 %v506, 0.0
  %v575 = vmax.f32 %v325, 0.0
  %v576 = vmax.f32 %v509, 0.0
  %v577 = vmax.f32 %v328, 0.0
  %v578 = vmax.f32 %v512, 0.0
  %v579 = vmax.f32 %v331, 0.0
  %v580 = vmax.f32 %v515, 0.0
  %v581 = vmax.f32 %v334, 0.0
  %v582 = vmax.f32 %v518, 0.0
  %v583 = vmax.f32 %v337, 0.0
  %v584 = vmax.f32 %v521, 0.0
  %v585 = vmax.f32 %v340, 0.0
  %v586 = vmax.f32 %v524, 0.0
  %v587 = vmax.f32 %v343, 0.0
  %v588 = vmax.f32 %v527, 0.0
  %v589 = vmax.f32 %v346, 0.0
  %v590 = vmax.f32 %v530, 0.0
  %v591 = vmax.f32 %v349, 0.0
  %v592 = vmax.f32 %v533, 0.0
  %v593 = vmax.f32 %v352, 0.0
  %v594 = vmax.f32 %v536, 0.0
  %v595 = vmax.f32 %v355, 0.0
  %v596 = vmax.f32 %v539, 0.0
  %v597 = vmax.f32 %v358, 0.0
  %v598 = vmax.f32 %v542, 0.0
  %v599 = vmax.f32 %v361, 0.0
  %v600 = vmax.f32 %v545, 0.0
  %v601 = vmax.f32 %v364, 0.0
  %v602 = vmax.f32 %v548, 0.0
  %v603 = vmax.f32 %v367, 0.0
  %v604 = vmax.f32 %v551, 0.0
  %v605 = vmax.f32 %v370, 0.0
  %v606 = vmax.f32 %v554, 0.0
  %v607 = vmax.f32 %v373, 0.0
  %v608 = vmax.f32 %v557, 0.0
  %v609 = vld [vmem:[%s2] sm:$0xff]
  %v610 = vld [vmem:[%s2 + $0x8] sm:$0xff]
  %vm611 = vcmask 588800
  %v613 = vsel %vm611, %v610, 0
  %615 = vmatpush.msra.mxu0 %v589
  %616 = vmatpush.msra.mxu0 %v587
  %617 = vmatpush.msra.mxu0 %v585
  %618 = vmatpush.msra.mxu0 %v583
  %619 = vmatpush.msra.mxu0 %v581
  %620 = vmatpush.msra.mxu0 %v579
  %621 = vmatpush.msra.mxu0 %v577
  %622 = vmatpush.msra.mxu0 %v575
  %623 = vmatpush.msra.mxu0 %v573
  %624 = vmatpush.msra.mxu0 %v571
  %625 = vmatpush.msra.mxu0 %v569
  %626 = vmatpush.msra.mxu0 %v567
  %627 = vmatpush.msra.mxu0 %v565
  %628 = vmatpush.msra.mxu0 %v563
  %629 = vmatpush.msra.mxu0 %v561
  %630 = vmatpush.msra.mxu0 %v559
  %631 = vmatmul.f32.gmra.mxu0 %v609
  %v632 = vpop.f32.mrf.mxu0
  %v633 = vadd.f32 0.0, %v632
  %634 = vdwg.mxu0
  %635 = vmatpush.msra.mxu0 0.0
  %636 = vmatpush.msra.mxu0 0.0
  %637 = vmatpush.msra.mxu0 0.0
  %638 = vmatpush.msra.mxu0 0.0
  %639 = vmatpush.msra.mxu0 0.0
  %640 = vmatpush.msra.mxu0 0.0
  %641 = vmatpush.msra.mxu0 0.0
  %642 = vmatpush.msra.mxu0 %v607
  %643 = vmatpush.msra.mxu0 %v605
  %644 = vmatpush.msra.mxu0 %v603
  %645 = vmatpush.msra.mxu0 %v601
  %646 = vmatpush.msra.mxu0 %v599
  %647 = vmatpush.msra.mxu0 %v597
  %648 = vmatpush.msra.mxu0 %v595
  %649 = vmatpush.msra.mxu0 %v593
  %650 = vmatpush.msra.mxu0 %v591
  %651 = vmatmul.f32.gmra.mxu0 %v613
  %v652 = vpop.f32.mrf.mxu0
  %v653 = vadd.f32 %v633, %v652
  %654 = vdwg.mxu0
  %655 = vmatpush.msra.mxu0 %v590
  %656 = vmatpush.msra.mxu0 %v588
  %657 = vmatpush.msra.mxu0 %v586
  %658 = vmatpush.msra.mxu0 %v584
  %659 = vmatpush.msra.mxu0 %v582
  %660 = vmatpush.msra.mxu0 %v580
  %661 = vmatpush.msra.mxu0 %v578
  %662 = vmatpush.msra.mxu0 %v576
  %663 = vmatpush.msra.mxu0 %v574
  %664 = vmatpush.msra.mxu0 %v572
  %665 = vmatpush.msra.mxu0 %v570
  %666 = vmatpush.msra.mxu0 %v568
  %667 = vmatpush.msra.mxu0 %v566
  %668 = vmatpush.msra.mxu0 %v564
  %669 = vmatpush.msra.mxu0 %v562
  %670 = vmatpush.msra.mxu0 %v560
  %671 = vmatmul.f32.gmra.mxu0 %v609
  %v672 = vpop.f32.mrf.mxu0
  %v673 = vadd.f32 0.0, %v672
  %674 = vdwg.mxu0
  %675 = vmatpush.msra.mxu0 0.0
  %676 = vmatpush.msra.mxu0 0.0
  %677 = vmatpush.msra.mxu0 0.0
  %678 = vmatpush.msra.mxu0 0.0
  %679 = vmatpush.msra.mxu0 0.0
  %680 = vmatpush.msra.mxu0 0.0
  %681 = vmatpush.msra.mxu0 0.0
  %682 = vmatpush.msra.mxu0 %v608
  %683 = vmatpush.msra.mxu0 %v606
  %684 = vmatpush.msra.mxu0 %v604
  %685 = vmatpush.msra.mxu0 %v602
  %686 = vmatpush.msra.mxu0 %v600
  %687 = vmatpush.msra.mxu0 %v598
  %688 = vmatpush.msra.mxu0 %v596
  %689 = vmatpush.msra.mxu0 %v594
  %690 = vmatpush.msra.mxu0 %v592
  %691 = vmatmul.f32.gmra.mxu0 %v613
  %v692 = vpop.f32.mrf.mxu0
  %v693 = vadd.f32 %v673, %v692
  %694 = vdwg.mxu0
  %v695 = vmax.f32 %v653, 0.0
  %v696 = vmax.f32 %v693, 0.0
  %v697 = vld [vmem:[%s3] sm:$0xff]
  %v698 = vld [vmem:[%s3 + $0x8] sm:$0xff]
  %v699 = vld [vmem:[%s4] sm:$0xff]
  %v700 = vld [vmem:[%s4 + $0x8] sm:$0xff]
  %702 = vset.pattern.permute.xlu0 0
  %703 = vperm.xlu0 %702, %v699
  %v704 = vpop.permute.xlu0 %703
  %707 = vset.pattern.permute.xlu0 0
  %708 = vperm.xlu0 %707, %v700
  %v709 = vpop.permute.xlu0 %708
  %vm711 = vcmask 64512
  %v713 = vsel %vm711, %v697, 0
  %v716 = vsel %vm711, %v698, 0
  %718 = vmatpush.msra.mxu0 0.0
  %719 = vmatpush.msra.mxu0 0.0
  %720 = vmatpush.msra.mxu0 0.0
  %721 = vmatpush.msra.mxu0 0.0
  %722 = vmatpush.msra.mxu0 0.0
  %723 = vmatpush.msra.mxu0 0.0
  %724 = vmatpush.msra.mxu0 0.0
  %725 = vmatpush.msra.mxu0 0.0
  %726 = vmatpush.msra.mxu0 0.0
  %727 = vmatpush.msra.mxu0 0.0
  %728 = vmatpush.msra.mxu0 0.0
  %729 = vmatpush.msra.mxu0 0.0
  %730 = vmatpush.msra.mxu0 0.0
  %731 = vmatpush.msra.mxu0 0.0
  %732 = vmatpush.msra.mxu0 0.0
  %733 = vmatpush.msra.mxu0 %v695
  %734 = vmatmul.f32.gmra.mxu0 %v713
  %v735 = vpop.f32.mrf.mxu0
  %v736 = vadd.f32 %v704, %v735
  %737 = vmatmul.f32.gmra.mxu0 %v716
  %v738 = vpop.f32.mrf.mxu0
  %v739 = vadd.f32 %v709, %v738
  %740 = vdwg.mxu0
  %741 = vmatpush.msra.mxu0 0.0
  %742 = vmatpush.msra.mxu0 0.0
  %743 = vmatpush.msra.mxu0 0.0
  %744 = vmatpush.msra.mxu0 0.0
  %745 = vmatpush.msra.mxu0 0.0
  %746 = vmatpush.msra.mxu0 0.0
  %747 = vmatpush.msra.mxu0 0.0
  %748 = vmatpush.msra.mxu0 0.0
  %749 = vmatpush.msra.mxu0 0.0
  %750 = vmatpush.msra.mxu0 0.0
  %751 = vmatpush.msra.mxu0 0.0
  %752 = vmatpush.msra.mxu0 0.0
  %753 = vmatpush.msra.mxu0 0.0
  %754 = vmatpush.msra.mxu0 0.0
  %755 = vmatpush.msra.mxu0 0.0
  %756 = vmatpush.msra.mxu0 %v696
  %757 = vmatmul.f32.gmra.mxu0 %v713
  %v758 = vpop.f32.mrf.mxu0
  %v759 = vadd.f32 %v704, %v758
  %760 = vmatmul.f32.gmra.mxu0 %v716
  %v761 = vpop.f32.mrf.mxu0
  %v762 = vadd.f32 %v709, %v761
  %763 = vdwg.mxu0
  %v764 = vmax.f32 %v736, 0.0
  %v765 = vmax.f32 %v759, 0.0
  %v766 = vmax.f32 %v739, 0.0
  %v767 = vmax.f32 %v762, 0.0
  %768 = vst [vmem:[%s5] sm:$0xff] %v764
  %769 = vst.msk [vmem:[%s5 + $0x8] sm:$0xff] %vm611, %v765
  %770 = vst [vmem:[%s5 + $0x10] sm:$0xff] %v766
  %771 = vst.msk [vmem:[%s5 + $0x18] sm:$0xff] %vm611, %v767
  // Predicated region
  $region22: #{netdec_forward.4} parent=0 // pred_check
    _
  $region23: #{netdec_forward.4} parent=0 // pred_check_branch
    %773 = sbr.rel (0) target = $region25
  $region24: #{netdec_forward.4} parent=0 // pred_region
    _
  $region25: #{netdec_forward.4} parent=0 // pred_fallthru
    _
  // Predicated region
  $region26: #{netdec_forward.4} parent=0 // pred_check
    _
  $region27: #{netdec_forward.4} parent=0 // pred_check_branch
    %775 = sbr.rel (0) target = $region29
  $region28: #{netdec_forward.4} parent=0 // pred_region
    _
  $region29: #{netdec_forward.4} parent=0 // pred_fallthru
    _

// kernel: netdec_forward.5
$region0: #{netdec_forward.5}
  #allocation0 [shape = 'u32[]', space=smem, size = 0x4, offset = 0x4, fixed_abs, tag = 'smem constant byte address 0x4 - core index']
  #allocation1 [shape = 'u32[72,128]{1,0:T(1,128)}', space=vmem, size = 0x9000, scoped, tag = 'internal scratch']
  %s0 = inlined_call_operand.vmem [shape: f32[2,400], index: 0, kind: input, shape index: {}]
  %s1 = inlined_call_operand.vmem [shape: f32[400,64], index: 1, kind: input, shape index: {}]
  %s2 = inlined_call_operand.vmem [shape: f32[64,48], index: 2, kind: input, shape index: {}]
  %s3 = inlined_call_operand.vmem [shape: f32[48,120], index: 3, kind: input, shape index: {}]
  %s4 = inlined_call_operand.vmem [shape: f32[1,120], index: 4, kind: input, shape index: {}]
  %s5 = inlined_call_operand.vmem [shape: f32[120,32], index: 5, kind: input, shape index: {}]
  %s6 = inlined_call_operand.vmem [shape: f32[32,84], index: 6, kind: input, shape index: {}]
  %s7 = inlined_call_operand.vmem [shape: f32[1,84], index: 7, kind: input, shape index: {}]
  %s8 = inlined_call_operand.vmem [shape: f32[84,10], index: 8, kind: input, shape index: {}]
  %s9 = inlined_call_operand.vmem [shape: f32[1,10], index: 9, kind: input, shape index: {}]
  %s10 = inlined_call_operand.hbm [shape: f32[2,10], index: 10, kind: output, shape index: {}]
  %s11 = sld [smem:[#allocation0]]
  $region50: #{netdec_forward.5} parent=0
    _
  %s13 = ssub.s32 1, %s11
  %s14 = scalar_select 0, %s13, %s11
  $region1: #{netdec_forward.5} parent=0
    #allocation2 [shape = 'u8[1024]{0}', space=vmem, size = 0x400, scoped, tag = 'output window, operand 0, single buffered']
    #allocation3 [shape = 's32[1]{0}', space=sflag, size = 0x4, scoped, tag = 'scoped memory for netdec_forward.5']
    %15 = vsyncpa [#allocation3], 0
    // Predicated region
    $region2: #{netdec_forward.5} parent=1 // pred_check
      _
    $region3: #{netdec_forward.5} parent=1 // pred_check_branch
      %17 = sbr.rel (0) target = $region5
    $region4: #{netdec_forward.5} parent=1 // pred_region
      _
    $region5: #{netdec_forward.5} parent=1 // pred_fallthru
      _
    // Predicated region
    $region6: #{netdec_forward.5} parent=1 // pred_check
      _
    $region7: #{netdec_forward.5} parent=1 // pred_check_branch
      %19 = sbr.rel (0) target = $region9
    $region8: #{netdec_forward.5} parent=1 // pred_region
      _
    $region9: #{netdec_forward.5} parent=1 // pred_fallthru
      _
    // Predicated region
    $region10: #{netdec_forward.5} parent=1 // pred_check
      _
    $region11: #{netdec_forward.5} parent=1 // pred_check_branch
      %21 = sbr.rel (0) target = $region13
    $region12: #{netdec_forward.5} parent=1 // pred_region
      _
    $region13: #{netdec_forward.5} parent=1 // pred_fallthru
      _
    // Predicated region
    $region14: #{netdec_forward.5} parent=1 // pred_check
      _
    $region15: #{netdec_forward.5} parent=1 // pred_check_branch
      %23 = sbr.rel (0) target = $region17
    $region16: #{netdec_forward.5} parent=1 // pred_region
      _
    $region17: #{netdec_forward.5} parent=1 // pred_fallthru
      _
    // Predicated region
    $region18: #{netdec_forward.5} parent=1 // pred_check
      _
    $region19: #{netdec_forward.5} parent=1 // pred_check_branch
      %25 = sbr.rel (0) target = $region21
    $region20: #{netdec_forward.5} parent=1 // pred_region
      _
    $region21: #{netdec_forward.5} parent=1 // pred_fallthru
      _
    // Predicated region
    $region22: #{netdec_forward.5} parent=1 // pred_check
      _
    $region23: #{netdec_forward.5} parent=1 // pred_check_branch
      %27 = sbr.rel (0) target = $region25
    $region24: #{netdec_forward.5} parent=1 // pred_region
      _
    $region25: #{netdec_forward.5} parent=1 // pred_fallthru
      _
    // Predicated region
    $region26: #{netdec_forward.5} parent=1 // pred_check
      _
    $region27: #{netdec_forward.5} parent=1 // pred_check_branch
      %29 = sbr.rel (0) target = $region29
    $region28: #{netdec_forward.5} parent=1 // pred_region
      _
    $region29: #{netdec_forward.5} parent=1 // pred_fallthru
      _
    // Predicated region
    $region30: #{netdec_forward.5} parent=1 // pred_check
      _
    $region31: #{netdec_forward.5} parent=1 // pred_check_branch
      %31 = sbr.rel (0) target = $region33
    $region32: #{netdec_forward.5} parent=1 // pred_region
      _
    $region33: #{netdec_forward.5} parent=1 // pred_fallthru
      _
    // Predicated region
    $region34: #{netdec_forward.5} parent=1 // pred_check
      _
    $region35: #{netdec_forward.5} parent=1 // pred_check_branch
      %33 = sbr.rel (0) target = $region37
    $region36: #{netdec_forward.5} parent=1 // pred_region
      _
    $region37: #{netdec_forward.5} parent=1 // pred_fallthru
      _
    // Predicated region
    $region38: #{netdec_forward.5} parent=1 // pred_check
      _
    $region39: #{netdec_forward.5} parent=1 // pred_check_branch
      %35 = sbr.rel (0) target = $region41
    $region40: #{netdec_forward.5} parent=1 // pred_region
      _
    $region41: #{netdec_forward.5} parent=1 // pred_fallthru
      _
    %v36 = vld [vmem:[%s0] sm:$0xff]
    %v37 = vld [vmem:[%s1] sm:$0xff]
    %v38 = vld [vmem:[%s1 + $0x8] sm:$0xff]
    %v39 = vld [vmem:[%s1 + $0x10] sm:$0xff]
    %v40 = vld [vmem:[%s1 + $0x18] sm:$0xff]
    %v41 = vld [vmem:[%s1 + $0x20] sm:$0xff]
    %v42 = vld [vmem:[%s1 + $0x28] sm:$0xff]
    %v43 = vld [vmem:[%s1 + $0x30] sm:$0xff]
    %v44 = vld [vmem:[%s1 + $0x38] sm:$0xff]
    %v45 = vld [vmem:[%s1 + $0x40] sm:$0xff]
    %v46 = vld [vmem:[%s1 + $0x48] sm:$0xff]
    %v47 = vld [vmem:[%s1 + $0x50] sm:$0xff]
    %v48 = vld [vmem:[%s1 + $0x58] sm:$0xff]
    %v49 = vld [vmem:[%s1 + $0x60] sm:$0xff]
    %v50 = vld [vmem:[%s1 + $0x68] sm:$0xff]
    %v51 = vld [vmem:[%s1 + $0x70] sm:$0xff]
    %v52 = vld [vmem:[%s1 + $0x78] sm:$0xff]
    %v53 = vld [vmem:[%s1 + $0x80] sm:$0xff]
    %v54 = vld [vmem:[%s1 + $0x88] sm:$0xff]
    %v55 = vld [vmem:[%s1 + $0x90] sm:$0xff]
    %v56 = vld [vmem:[%s1 + $0x98] sm:$0xff]
    %v57 = vld [vmem:[%s1 + $0xa0] sm:$0xff]
    %v58 = vld [vmem:[%s1 + $0xa8] sm:$0xff]
    %v59 = vld [vmem:[%s1 + $0xb0] sm:$0xff]
    %v60 = vld [vmem:[%s1 + $0xb8] sm:$0xff]
    %v61 = vld [vmem:[%s1 + $0xc0] sm:$0xff]
    %v62 = vld [vmem:[%s1 + $0xc8] sm:$0xff]
    %v63 = vld [vmem:[%s1 + $0xd0] sm:$0xff]
    %v64 = vld [vmem:[%s1 + $0xd8] sm:$0xff]
    %v65 = vld [vmem:[%s1 + $0xe0] sm:$0xff]
    %v66 = vld [vmem:[%s1 + $0xe8] sm:$0xff]
    %v67 = vld [vmem:[%s1 + $0xf0] sm:$0xff]
    %v68 = vld [vmem:[%s1 + $0xf8] sm:$0xff]
    %v69 = vld [vmem:[%s1 + $0x100] sm:$0xff]
    %v70 = vld [vmem:[%s1 + $0x108] sm:$0xff]
    %v71 = vld [vmem:[%s1 + $0x110] sm:$0xff]
    %v72 = vld [vmem:[%s1 + $0x118] sm:$0xff]
    %v73 = vld [vmem:[%s1 + $0x120] sm:$0xff]
    %v74 = vld [vmem:[%s1 + $0x128] sm:$0xff]
    %v75 = vld [vmem:[%s1 + $0x130] sm:$0xff]
    %v76 = vld [vmem:[%s1 + $0x138] sm:$0xff]
    %v77 = vld [vmem:[%s1 + $0x140] sm:$0xff]
    %v78 = vld [vmem:[%s1 + $0x148] sm:$0xff]
    %v79 = vld [vmem:[%s1 + $0x150] sm:$0xff]
    %v80 = vld [vmem:[%s1 + $0x158] sm:$0xff]
    %v81 = vld [vmem:[%s1 + $0x160] sm:$0xff]
    %v82 = vld [vmem:[%s1 + $0x168] sm:$0xff]
    %v83 = vld [vmem:[%s1 + $0x170] sm:$0xff]
    %v84 = vld [vmem:[%s1 + $0x178] sm:$0xff]
    %v85 = vld [vmem:[%s1 + $0x180] sm:$0xff]
    %v86 = vld [vmem:[%s1 + $0x188] sm:$0xff]
    %88 = vst [vmem:[#allocation1] ss:$4 sm:$0xff] %v36
    %v89 = vld.sshfl [vmem:[#allocation1] sm:$0xff pattern:$0x73625140]
    %v90 = vld.sshfl [vmem:[#allocation1 + $0x8] sm:$0xff pattern:$0x73625140]
    %v91 = vld.sshfl [vmem:[#allocation1 + $0x10] sm:$0xff pattern:$0x73625140]
    %v92 = vld.sshfl [vmem:[#allocation1 + $0x18] sm:$0xff pattern:$0x73625140]
    %vm96 = vcmask 130048
    %v97 = vsel %vm96, %v92, 0
    %99 = vmatpush.msra.mxu0 %v52
    %100 = vmatpush.msra.mxu0 %v51
    %101 = vmatpush.msra.mxu0 %v50
    %102 = vmatpush.msra.mxu0 %v49
    %103 = vmatpush.msra.mxu0 %v48
    %104 = vmatpush.msra.mxu0 %v47
    %105 = vmatpush.msra.mxu0 %v46
    %106 = vmatpush.msra.mxu0 %v45
    %107 = vmatpush.msra.mxu0 %v44
    %108 = vmatpush.msra.mxu0 %v43
    %109 = vmatpush.msra.mxu0 %v42
    %110 = vmatpush.msra.mxu0 %v41
    %111 = vmatpush.msra.mxu0 %v40
    %112 = vmatpush.msra.mxu0 %v39
    %113 = vmatpush.msra.mxu0 %v38
    %114 = vmatpush.msra.mxu0 %v37
    %115 = vmatmul.f32.gmra.mxu0 %v89
    %v116 = vpop.f32.mrf.mxu0
    %v117 = vadd.f32 0.0, %v116
    %118 = vdwg.mxu0
    %119 = vmatpush.msra.mxu0 %v68
    %120 = vmatpush.msra.mxu0 %v67
    %121 = vmatpush.msra.mxu0 %v66
    %122 = vmatpush.msra.mxu0 %v65
    %123 = vmatpush.msra.mxu0 %v64
    %124 = vmatpush.msra.mxu0 %v63
    %125 = vmatpush.msra.mxu0 %v62
    %126 = vmatpush.msra.mxu0 %v61
    %127 = vmatpush.msra.mxu0 %v60
    %128 = vmatpush.msra.mxu0 %v59
    %129 = vmatpush.msra.mxu0 %v58
    %130 = vmatpush.msra.mxu0 %v57
    %131 = vmatpush.msra.mxu0 %v56
    %132 = vmatpush.msra.mxu0 %v55
    %133 = vmatpush.msra.mxu0 %v54
    %134 = vmatpush.msra.mxu0 %v53
    %135 = vmatmul.f32.gmra.mxu0 %v90
    %v136 = vpop.f32.mrf.mxu0
    %v137 = vadd.f32 %v117, %v136
    %138 = vdwg.mxu0
    %139 = vmatpush.msra.mxu0 %v84
    %140 = vmatpush.msra.mxu0 %v83
    %141 = vmatpush.msra.mxu0 %v82
    %142 = vmatpush.msra.mxu0 %v81
    %143 = vmatpush.msra.mxu0 %v80
    %144 = vmatpush.msra.mxu0 %v79
    %145 = vmatpush.msra.mxu0 %v78
    %146 = vmatpush.msra.mxu0 %v77
    %147 = vmatpush.msra.mxu0 %v76
    %148 = vmatpush.msra.mxu0 %v75
    %149 = vmatpush.msra.mxu0 %v74
    %150 = vmatpush.msra.mxu0 %v73
    %151 = vmatpush.msra.mxu0 %v72
    %152 = vmatpush.msra.mxu0 %v71
    %153 = vmatpush.msra.mxu0 %v70
    %154 = vmatpush.msra.mxu0 %v69
    %155 = vmatmul.f32.gmra.mxu0 %v91
    %v156 = vpop.f32.mrf.mxu0
    %v157 = vadd.f32 %v137, %v156
    %158 = vdwg.mxu0
    %159 = vmatpush.msra.mxu0 0.0
    %160 = vmatpush.msra.mxu0 0.0
    %161 = vmatpush.msra.mxu0 0.0
    %162 = vmatpush.msra.mxu0 0.0
    %163 = vmatpush.msra.mxu0 0.0
    %164 = vmatpush.msra.mxu0 0.0
    %165 = vmatpush.msra.mxu0 0.0
    %166 = vmatpush.msra.mxu0 0.0
    %167 = vmatpush.msra.mxu0 0.0
    %168 = vmatpush.msra.mxu0 0.0
    %169 = vmatpush.msra.mxu0 0.0
    %170 = vmatpush.msra.mxu0 0.0
    %171 = vmatpush.msra.mxu0 0.0
    %172 = vmatpush.msra.mxu0 0.0
    %173 = vmatpush.msra.mxu0 %v86
    %174 = vmatpush.msra.mxu0 %v85
    %175 = vmatmul.f32.gmra.mxu0 %v97
    %v176 = vpop.f32.mrf.mxu0
    %v177 = vadd.f32 %v157, %v176
    %178 = vdwg.mxu0
    %v179 = vmax.f32 %v177, 0.0
    %v180 = vld [vmem:[%s2] sm:$0xff]
    %v181 = vld [vmem:[%s2 + $0x8] sm:$0xff]
    %v182 = vld [vmem:[%s2 + $0x10] sm:$0xff]
    %v183 = vld [vmem:[%s2 + $0x18] sm:$0xff]
    %v184 = vld [vmem:[%s2 + $0x20] sm:$0xff]
    %v185 = vld [vmem:[%s2 + $0x28] sm:$0xff]
    %v186 = vld [vmem:[%s2 + $0x30] sm:$0xff]
    %v187 = vld [vmem:[%s2 + $0x38] sm:$0xff]
    %vm188 = vcmask 523264
    %v190 = vsel %vm188, %v179, 0
    %192 = vmatpush.msra.mxu0 0.0
    %193 = vmatpush.msra.mxu0 0.0
    %194 = vmatpush.msra.mxu0 0.0
    %195 = vmatpush.msra.mxu0 0.0
    %196 = vmatpush.msra.mxu0 0.0
    %197 = vmatpush.msra.mxu0 0.0
    %198 = vmatpush.msra.mxu0 0.0
    %199 = vmatpush.msra.mxu0 0.0
    %200 = vmatpush.msra.mxu0 %v187
    %201 = vmatpush.msra.mxu0 %v186
    %202 = vmatpush.msra.mxu0 %v185
    %203 = vmatpush.msra.mxu0 %v184
    %204 = vmatpush.msra.mxu0 %v183
    %205 = vmatpush.msra.mxu0 %v182
    %206 = vmatpush.msra.mxu0 %v181
    %207 = vmatpush.msra.mxu0 %v180
    %208 = vmatmul.f32.gmra.mxu0 %v190
    %v209 = vpop.f32.mrf.mxu0
    %v210 = vadd.f32 0.0, %v209
    %211 = vdwg.mxu0
    %v212 = vmax.f32 %v210, 0.0
    %v213 = vld [vmem:[%s3] sm:$0xff]
    %v214 = vld [vmem:[%s3 + $0x8] sm:$0xff]
    %v215 = vld [vmem:[%s3 + $0x10] sm:$0xff]
    %v216 = vld [vmem:[%s3 + $0x18] sm:$0xff]
    %v217 = vld [vmem:[%s3 + $0x20] sm:$0xff]
    %v218 = vld [vmem:[%s3 + $0x28] sm:$0xff]
    %v219 = vld [vmem:[%s4] sm:$0x1]
    %v221 = vperm.slane %v219, 0
    %vm223 = vcmask 392192
    %v225 = vsel %vm223, %v212, 0
    %227 = vmatpush.msra.mxu0 0.0
    %228 = vmatpush.msra.mxu0 0.0
    %229 = vmatpush.msra.mxu0 0.0
    %230 = vmatpush.msra.mxu0 0.0
    %231 = vmatpush.msra.mxu0 0.0
    %232 = vmatpush.msra.mxu0 0.0
    %233 = vmatpush.msra.mxu0 0.0
    %234 = vmatpush.msra.mxu0 0.0
    %235 = vmatpush.msra.mxu0 0.0
    %236 = vmatpush.msra.mxu0 0.0
    %237 = vmatpush.msra.mxu0 %v218
    %238 = vmatpush.msra.mxu0 %v217
    %239 = vmatpush.msra.mxu0 %v216
    %240 = vmatpush.msra.mxu0 %v215
    %241 = vmatpush.msra.mxu0 %v214
    %242 = vmatpush.msra.mxu0 %v213
    %243 = vmatmul.f32.gmra.mxu0 %v225
    %v244 = vpop.f32.mrf.mxu0
    %v245 = vadd.f32 %v221, %v244
    %246 = vdwg.mxu0
    %v247 = vmax.f32 %v245, 0.0
    %v248 = vld [vmem:[%s5] sm:$0xff]
    %v249 = vld [vmem:[%s5 + $0x8] sm:$0xff]
    %v250 = vld [vmem:[%s5 + $0x10] sm:$0xff]
    %v251 = vld [vmem:[%s5 + $0x18] sm:$0xff]
    %v252 = vld [vmem:[%s5 + $0x20] sm:$0xff]
    %v253 = vld [vmem:[%s5 + $0x28] sm:$0xff]
    %v254 = vld [vmem:[%s5 + $0x30] sm:$0xff]
    %v255 = vld [vmem:[%s5 + $0x38] sm:$0xff]
    %v256 = vld [vmem:[%s5 + $0x40] sm:$0xff]
    %v257 = vld [vmem:[%s5 + $0x48] sm:$0xff]
    %v258 = vld [vmem:[%s5 + $0x50] sm:$0xff]
    %v259 = vld [vmem:[%s5 + $0x58] sm:$0xff]
    %v260 = vld [vmem:[%s5 + $0x60] sm:$0xff]
    %v261 = vld [vmem:[%s5 + $0x68] sm:$0xff]
    %v262 = vld [vmem:[%s5 + $0x70] sm:$0xff]
    %vm263 = vcmask 982016
    %v265 = vsel %vm263, %v247, 0
    %267 = vmatpush.msra.mxu0 0.0
    %268 = vmatpush.msra.mxu0 %v262
    %269 = vmatpush.msra.mxu0 %v261
    %270 = vmatpush.msra.mxu0 %v260
    %271 = vmatpush.msra.mxu0 %v259
    %272 = vmatpush.msra.mxu0 %v258
    %273 = vmatpush.msra.mxu0 %v257
    %274 = vmatpush.msra.mxu0 %v256
    %275 = vmatpush.msra.mxu0 %v255
    %276 = vmatpush.msra.mxu0 %v254
    %277 = vmatpush.msra.mxu0 %v253
    %278 = vmatpush.msra.mxu0 %v252
    %279 = vmatpush.msra.mxu0 %v251
    %280 = vmatpush.msra.mxu0 %v250
    %281 = vmatpush.msra.mxu0 %v249
    %282 = vmatpush.msra.mxu0 %v248
    %283 = vmatmul.f32.gmra.mxu0 %v265
    %v284 = vpop.f32.mrf.mxu0
    %v285 = vadd.f32 0.0, %v284
    %286 = vdwg.mxu0
    %v287 = vmax.f32 %v285, 0.0
    %v288 = vld [vmem:[%s6] sm:$0xff]
    %v289 = vld [vmem:[%s6 + $0x8] sm:$0xff]
    %v290 = vld [vmem:[%s6 + $0x10] sm:$0xff]
    %v291 = vld [vmem:[%s6 + $0x18] sm:$0xff]
    %v292 = vld [vmem:[%s7] sm:$0x1]
    %v294 = vperm.slane %v292, 0
    %vm296 = vcmask 261120
    %v298 = vsel %vm296, %v287, 0
    %300 = vmatpush.msra.mxu0 0.0
    %301 = vmatpush.msra.mxu0 0.0
    %302 = vmatpush.msra.mxu0 0.0
    %303 = vmatpush.msra.mxu0 0.0
    %304 = vmatpush.msra.mxu0 0.0
    %305 = vmatpush.msra.mxu0 0.0
    %306 = vmatpush.msra.mxu0 0.0
    %307 = vmatpush.msra.mxu0 0.0
    %308 = vmatpush.msra.mxu0 0.0
    %309 = vmatpush.msra.mxu0 0.0
    %310 = vmatpush.msra.mxu0 0.0
    %311 = vmatpush.msra.mxu0 0.0
    %312 = vmatpush.msra.mxu0 %v291
    %313 = vmatpush.msra.mxu0 %v290
    %314 = vmatpush.msra.mxu0 %v289
    %315 = vmatpush.msra.mxu0 %v288
    %316 = vmatmul.f32.gmra.mxu0 %v298
    %v317 = vpop.f32.mrf.mxu0
    %v318 = vadd.f32 %v294, %v317
    %319 = vdwg.mxu0
    %v320 = vmax.f32 %v318, 0.0
    %v321 = vld [vmem:[%s8] sm:$0xff]
    %v322 = vld [vmem:[%s8 + $0x8] sm:$0xff]
    %v323 = vld [vmem:[%s8 + $0x10] sm:$0xff]
    %v324 = vld [vmem:[%s8 + $0x18] sm:$0xff]
    %v325 = vld [vmem:[%s8 + $0x20] sm:$0xff]
    %v326 = vld [vmem:[%s8 + $0x28] sm:$0xff]
    %v327 = vld [vmem:[%s8 + $0x30] sm:$0xff]
    %v328 = vld [vmem:[%s8 + $0x38] sm:$0xff]
    %v329 = vld [vmem:[%s8 + $0x40] sm:$0xff]
    %v330 = vld [vmem:[%s8 + $0x48] sm:$0xff]
    %v331 = vld [vmem:[%s8 + $0x50] sm:$0xf]
    %v332 = vld [vmem:[%s9] sm:$0x1]
    %v334 = vperm.slane %v332, 0
    %vm336 = vcmask 687104
    %v338 = vsel %vm336, %v320, 0
    %vm340 = vcmask 1043456
    %v342 = vsel %vm340, %v331, 0
    %344 = vmatpush.msra.mxu0 0.0
    %345 = vmatpush.msra.mxu0 0.0
    %346 = vmatpush.msra.mxu0 0.0
    %347 = vmatpush.msra.mxu0 0.0
    %348 = vmatpush.msra.mxu0 0.0
    %349 = vmatpush.msra.mxu0 %v342
    %350 = vmatpush.msra.mxu0 %v330
    %351 = vmatpush.msra.mxu0 %v329
    %352 = vmatpush.msra.mxu0 %v328
    %353 = vmatpush.msra.mxu0 %v327
    %354 = vmatpush.msra.mxu0 %v326
    %355 = vmatpush.msra.mxu0 %v325
    %356 = vmatpush.msra.mxu0 %v324
    %357 = vmatpush.msra.mxu0 %v323
    %358 = vmatpush.msra.mxu0 %v322
    %359 = vmatpush.msra.mxu0 %v321
    %360 = vmatmul.f32.gmra.mxu0 %v338
    %v361 = vpop.f32.mrf.mxu0
    %v362 = vadd.f32 %v334, %v361
    %363 = vdwg.mxu0
    %vm364 = vcmask 74752
    %v365 = vsel %vm364, %v362, -inf
    %366 = vmax.xlane.f32.xlu0 %v365
    %v367 = vpop.xlane.xlu0 %366
    %v368 = vsub.f32 %v362, %v367
    %v369 = vmul.f32 %v368, 1.442695
    %v370 = vpow.pop %v369
    %v371 = vsel %vm364, %v370, 0.0
    %372 = vadd.xlane.f32.xlu0 %v371
    %v373 = vpop.xlane.xlu0 %372
    %v374 = vrcp.pop %v373
    %v375 = vmul.f32 %v370, %v374
    %376 = vst.msk [vmem:[#allocation2] sm:$0x3] %vm364, %v375
    // Predicated region
    $region42: #{netdec_forward.5} parent=1 // pred_check
      _
    $region43: #{netdec_forward.5} parent=1 // pred_check_branch
      %378 = sbr.rel (0) target = $region45
    $region44: #{netdec_forward.5} parent=1 // pred_region
      %380 = vsyncadd [#allocation3], 0
      %s382 = sshll.u32 [#allocation2], 4
      %s383 = int_to_ptr.vmem [resolvable:$true] %s382
      %s384 = sshll.u32 %s10, 4
      %s385 = int_to_ptr.hbm [resolvable:$true] %s384
      %387 = dma.vmem_to_hbm [thread:$0]  %s383, 32, %s385, [#allocation3]
    $region45: #{netdec_forward.5} parent=1 // pred_fallthru
      _
    // Predicated region
    $region46: #{netdec_forward.5} parent=1 // pred_check
      _
    $region47: #{netdec_forward.5} parent=1 // pred_check_branch
      %389 = sbr.rel (0) target = $region49
    $region48: #{netdec_forward.5} parent=1 // pred_region
      %391 = dma.done [#allocation3], 32
    $region49: #{netdec_forward.5} parent=1 // pred_fallthru
      _
    %392 = vsyncpa [#allocation3], 1

</llo_original>
